<compile_context>
chip_gen: v7x
topology: tpu7x:2x2x1
jax: 0.10.0
libtpu: 0.0.40
codegen_flags: <defaults>
</compile_context>

<pallas_src>
import functools

import jax
import jax.numpy as jnp
from jax.experimental import pallas as pl
from jax.experimental.pallas import tpu as pltpu


def _round_up(x, m):
    return (x + m - 1) // m * m


def _tpu_vmem_bytes():
    """Physical per-core VMEM, with a conservative (v7x-sized) fallback."""
    try:
        info = pltpu.get_tpu_info()
        for attr in ("vmem_capacity_bytes", "vmem_bytes", "vmem_size_bytes"):
            v = getattr(info, attr, None)
            if v:
                return int(v)
    except Exception:
        pass
    return 64 * 1024 * 1024


def _gen_tuning():
    """(scoped vmem_limit_bytes, max adjacency tile) per TPU generation."""
    phys = _tpu_vmem_bytes()
    if phys >= 128 * 1024 * 1024:          # v5e / v6e: 128 MiB physical VMEM
        return 100 * 1024 * 1024, 1024
    return 48 * 1024 * 1024, 512           # v7x: 64 MiB per TensorCore


def _pick_tile(n_nodes, tile_cap):
    if n_nodes >= 4096:
        t = 1024
    elif n_nodes >= 2048:
        t = 512
    elif n_nodes >= 512:
        t = 256
    else:
        t = 128
    t = min(t, tile_cap)
    # keep >= 2 row tiles when the graph allows, so the "parallel" row axis
    # can shard across the two TensorCores on v7x
    while t > 128 and _round_up(n_nodes, t) // t < 2:
        t //= 2
    return t


# --------------------------------------------------------------------------
# Kernels
# --------------------------------------------------------------------------
def _proj_kernel(x_ref, w_ref, s_ref, o_ref):
    """One row tile of  (X @ W) * d^-1/2[:, None]  (normalization pre-scale,
    applied in f32 before the cast to the streamed matmul dtype)."""
    r = jnp.dot(x_ref[...], w_ref[...], preferred_element_type=jnp.float32)
    o_ref[...] = (r * s_ref[...]).astype(o_ref.dtype)


def _gcn_accumulate(adj_ref, xw_ref, acc_ref, *, tile_k, xw_resident):
    # Hot path: int8 load -> cast -> MXU matmul. (Cast goes through f32 so the
    # int->float conversion stays on well-supported Mosaic paths; still hidden
    # under the MXU.)
    a_tile = adj_ref[...].astype(jnp.float32)
    if xw_ref.dtype != jnp.float32:
        a_tile = a_tile.astype(xw_ref.dtype)
    if xw_resident:
        k = pl.program_id(1)
        start = pl.multiple_of(k * tile_k, 128)
        xw = xw_ref[pl.ds(start, tile_k), :]
    else:
        xw = xw_ref[...]
    acc_ref[...] += jnp.dot(a_tile, xw, preferred_element_type=jnp.float32)


def _gcn_kernel_fused(adj_ref, xw_ref, dr_ref, b_ref, wn_ref, o_ref, acc_ref,
                      *, tile_k, xw_resident):
    """out_rows = d * (ReLU(d * (A @ xw) + b) @ W_next^T) with d = D^-1/2 rows.
    `xw` arrives already pre-scaled row-wise by d^-1/2; the trailing d scale
    pre-scales the result for the next GCN layer. W_next^T is pre-transposed."""
    k = pl.program_id(1)

    @pl.when(k == 0)
    def _init():
        acc_ref[...] = jnp.zeros_like(acc_ref)

    _gcn_accumulate(adj_ref, xw_ref, acc_ref, tile_k=tile_k,
                    xw_resident=xw_resident)

    @pl.when(k == pl.num_programs(1) - 1)
    def _finalize():
        d = dr_ref[...]                                     # f32 (tile_m, 1)
        h = jnp.maximum(acc_ref[...] * d + b_ref[...], 0.0)
        r = jnp.dot(h.astype(wn_ref.dtype), wn_ref[...],
                    preferred_element_type=jnp.float32)
        o_ref[...] = (r * d).astype(o_ref.dtype)


def _gcn_kernel_plain(adj_ref, xw_ref, dr_ref, b_ref, o_ref, acc_ref,
                      *, tile_k, xw_resident):
    """out_rows = d * (A @ xw) + b   (xw already pre-scaled row-wise)."""
    k = pl.program_id(1)

    @pl.when(k == 0)
    def _init():
        acc_ref[...] = jnp.zeros_like(acc_ref)

    _gcn_accumulate(adj_ref, xw_ref, acc_ref, tile_k=tile_k,
                    xw_resident=xw_resident)

    @pl.when(k == pl.num_programs(1) - 1)
    def _finalize():
        o_ref[...] = (acc_ref[...] * dr_ref[...] + b_ref[...]
                      ).astype(o_ref.dtype)


# --------------------------------------------------------------------------
# pallas_call wrappers
# --------------------------------------------------------------------------
def _projection(x, w_t, scale, *, tile_m, out_dtype, vmem_limit):
    n, kc = x.shape
    hp = w_t.shape[1]
    return pl.pallas_call(
        _proj_kernel,
        out_shape=jax.ShapeDtypeStruct((n, hp), out_dtype),
        grid=(n // tile_m,),
        in_specs=[
            pl.BlockSpec((tile_m, kc), lambda i: (i, 0)),   # feature row tile
            pl.BlockSpec((kc, hp), lambda i: (0, 0)),       # resident weight
            pl.BlockSpec((tile_m, 1), lambda i: (i, 0)),    # d^-1/2 pre-scale
        ],
        out_specs=pl.BlockSpec((tile_m, hp), lambda i: (i, 0)),
        compiler_params=pltpu.CompilerParams(
            dimension_semantics=("parallel",),
            vmem_limit_bytes=vmem_limit),
    )(x, w_t, scale)


def _gcn_layer(adj, xw, d_rows, bias, w_next, *, tile_m, tile_k, out_dtype,
               vmem_limit, xw_resident):
    n_pad = adj.shape[0]
    hp = xw.shape[1]
    grid = (n_pad // tile_m, n_pad // tile_k)

    if xw_resident:
        # whole feature matrix resident in VMEM -> no per-row-tile re-stream
        xw_spec = pl.BlockSpec((n_pad, hp), lambda i, k: (0, 0))
    else:
        xw_spec = pl.BlockSpec((tile_k, hp), lambda i, k: (k, 0))

    in_specs = [
        pl.BlockSpec((tile_m, tile_k), lambda i, k: (i, k)),   # int8 adjacency
        xw_spec,                                               # features
        pl.BlockSpec((tile_m, 1), lambda i, k: (i, 0)),        # row d^-1/2
        pl.BlockSpec((1, hp), lambda i, k: (0, 0)),            # bias row
    ]
    operands = [adj, xw, d_rows, bias]

    if w_next is not None:
        in_specs.append(pl.BlockSpec((hp, hp), lambda i, k: (0, 0)))
        operands.append(w_next)
        kernel = functools.partial(_gcn_kernel_fused, tile_k=tile_k,
                                   xw_resident=xw_resident)
    else:
        kernel = functools.partial(_gcn_kernel_plain, tile_k=tile_k,
                                   xw_resident=xw_resident)

    return pl.pallas_call(
        kernel,
        out_shape=jax.ShapeDtypeStruct((n_pad, hp), out_dtype),
        grid=grid,
        in_specs=in_specs,
        out_specs=pl.BlockSpec((tile_m, hp), lambda i, k: (i, 0)),
        scratch_shapes=[pltpu.VMEM((tile_m, hp), jnp.float32)],
        compiler_params=pltpu.CompilerParams(
            dimension_semantics=("parallel", "arbitrary"),
            vmem_limit_bytes=vmem_limit),
    )(*operands)


# --------------------------------------------------------------------------
# Forward pass
# --------------------------------------------------------------------------
def roberta_graph_encoder(doc_feats, word_feats, edge_index, params,
                          *, matmul_dtype=jnp.bfloat16):
    """doc_feats: [Nd, input_dim], word_feats: [Nw, 300], edge_index: [2, E].

    matmul_dtype=bfloat16 by default on all generations (adjacency is stored
    as int8 regardless); accumulation and the D^-1/2 normalization stay f32.
    """
    f32 = jnp.float32
    hi = jax.lax.Precision.HIGHEST
    mm_bytes = jnp.dtype(matmul_dtype).itemsize

    n_doc, input_dim = doc_feats.shape
    n_word, word_dim = word_feats.shape
    n_nodes = n_doc + n_word
    hidden_dim = params["w2"].shape[0]

    vmem_limit, tile_cap = _gen_tuning()
    tile = _pick_tile(n_nodes, tile_cap)
    n_pad = _round_up(n_nodes, tile)
    hp = _round_up(hidden_dim, 128)        # lane-dense hidden width
    dp = _round_up(input_dim, 128)         # doc-feature width
    wp = _round_up(word_dim + 1, 128)      # word features + bias-indicator col

    wl, bl = params["wl"].astype(f32), params["bl"].astype(f32)
    w1, b1 = params["w1"].astype(f32), params["b1"].astype(f32)
    w2, b2 = params["w2"].astype(f32), params["b2"].astype(f32)

    # ---- adjacency: int8 0/1 with self loops (set, not add) ----------------
    adj = jnp.zeros((n_pad, n_pad), jnp.int8)
    adj = adj.at[edge_index[0], edge_index[1]].set(1)
    diag = jnp.arange(n_nodes)
    adj = adj.at[diag, diag].set(1)
    deg = jnp.sum(adj, axis=1, dtype=f32)
    d_inv_sqrt = jnp.where(deg > 0.0,
                           jax.lax.rsqrt(jnp.where(deg > 0.0, deg, 1.0)),
                           0.0)
    d_rows = d_inv_sqrt.reshape(n_pad, 1)  # f32, applied once per finalize

    # ---- projections (doc / word split: no matmul on structural zeros) -----
    #   doc rows : xw = (doc @ W1^T)                 * d^-1/2
    #   word rows: xw = (word @ (W1 Wl)^T + bl W1^T) * d^-1/2   (Linear folded)
    w1t_pad = jnp.zeros((dp, hp), f32).at[:input_dim, :hidden_dim].set(w1.T)
    wword_t = jnp.zeros((wp, hp), f32)
    wword_t = wword_t.at[:word_dim, :hidden_dim].set(
        jnp.matmul(w1, wl, precision=hi).T)
    wword_t = wword_t.at[word_dim, :hidden_dim].set(
        jnp.matmul(bl, w1.T, precision=hi))
    w1t_pad = w1t_pad.astype(matmul_dtype)
    wword_t = wword_t.astype(matmul_dtype)

    def _proj_inputs(feats, cols_pad, n_rows):
        t = 256 if n_rows > 256 else _round_up(n_rows, 8)
        rows_pad = _round_up(n_rows, t)
        x = jnp.zeros((rows_pad, cols_pad), matmul_dtype)
        x = x.at[:n_rows, :feats.shape[1]].set(feats.astype(matmul_dtype))
        return x, rows_pad, t

    x_doc, nd_pad, td = _proj_inputs(doc_feats, dp, n_doc)
    x_word, nw_pad, tw = _proj_inputs(word_feats, wp, n_word)
    x_word = x_word.at[:n_word, word_dim].set(1.0)       # bias indicator col

    s_doc = jnp.zeros((nd_pad, 1), f32).at[:n_doc].set(d_rows[:n_doc])
    s_word = jnp.zeros((nw_pad, 1), f32).at[:n_word].set(
        d_rows[n_doc:n_nodes])

    xw_doc = _projection(x_doc, w1t_pad, s_doc, tile_m=td,
                         out_dtype=matmul_dtype, vmem_limit=vmem_limit)
    xw_word = _projection(x_word, wword_t, s_word, tile_m=tw,
                          out_dtype=matmul_dtype, vmem_limit=vmem_limit)

    xw1 = jnp.zeros((n_pad, hp), matmul_dtype)
    xw1 = xw1.at[:n_doc].set(xw_doc[:n_doc])
    xw1 = xw1.at[n_doc:n_nodes].set(xw_word[:n_word])

    # ---- GCN layers ---------------------------------------------------------
    w2t_pad = jnp.zeros((hp, hp), f32).at[:hidden_dim, :hidden_dim].set(w2.T)
    w2t_pad = w2t_pad.astype(matmul_dtype)
    b1_pad = jnp.zeros((1, hp), f32).at[0, :hidden_dim].set(b1)
    b2_pad = jnp.zeros((1, hp), f32).at[0, :hidden_dim].set(b2)

    def _fits_resident(out_itemsize):
        need = (2 * tile * tile * 1              # int8 adjacency, dbl-buffered
                + 2 * n_pad * hp * mm_bytes      # resident xw block
                + 2 * hp * hp * mm_bytes         # W2^T (fused layer only)
                + tile * hp * 4                  # f32 accumulator scratch
                + 2 * tile * hp * out_itemsize   # output tile, dbl-buffered
                + 2 * 1024 * 1024)               # headroom
        return need <= int(0.85 * vmem_limit)

    xw1_resident = _fits_resident(mm_bytes)
    hw2_resident = _fits_resident(4)

    # layer 1 (+ fused H @ W2^T, + D^-1/2 pre-scale of the layer-2 operand)
    hw2 = _gcn_layer(adj, xw1, d_rows, b1_pad, w2t_pad,
                     tile_m=tile, tile_k=tile, out_dtype=matmul_dtype,
                     vmem_limit=vmem_limit, xw_resident=xw1_resident)
    # layer 2
    out_pad = _gcn_layer(adj, hw2, d_rows, b2_pad, None,
                         tile_m=tile, tile_k=tile, out_dtype=f32,
                         vmem_limit=vmem_limit, xw_resident=hw2_resident)

    return out_pad[:n_nodes, :hidden_dim]


# --------------------------------------------------------------------------
# Params / reference / demo
# --------------------------------------------------------------------------
def init_params(key, input_dim, hidden_dim):
    k = jax.random.split(key, 6)
    scale = 0.02
    return {
        # nn.Linear(300, input_dim): weight (input_dim, 300), bias (input_dim,)
        "wl": scale * jax.random.normal(k[0], (input_dim, 300), jnp.float32),
        "bl": scale * jax.random.normal(k[1], (input_dim,), jnp.float32),
        # GCNConv(input_dim, hidden_dim)
        "w1": scale * jax.random.normal(k[2], (hidden_dim, input_dim), jnp.float32),
        "b1": scale * jax.random.normal(k[3], (hidden_dim,), jnp.float32),
        # GCNConv(hidden_dim, hidden_dim)
        "w2": scale * jax.random.normal(k[4], (hidden_dim, hidden_dim), jnp.float32),
        "b2": scale * jax.random.normal(k[5], (hidden_dim,), jnp.float32),
    }


def _reference(doc_feats, word_feats, edge_index, params):
    """Pure-JAX reference of the module forward (high-precision matmuls)."""
    mm = functools.partial(jnp.matmul, precision=jax.lax.Precision.HIGHEST)
    n = doc_feats.shape[0] + word_feats.shape[0]
    wproj = mm(word_feats, params["wl"].T) + params["bl"]
    x = jnp.concatenate([doc_feats, wproj], axis=0)
    adj = jnp.zeros((n, n), jnp.float32)
    adj = adj.at[edge_index[0], edge_index[1]].set(1.0)
    adj = adj.at[jnp.arange(n), jnp.arange(n)].set(1.0)
    deg = adj.sum(axis=1)
    d = jnp.where(deg > 0, 1.0 / jnp.sqrt(jnp.where(deg > 0, deg, 1.0)), 0.0)
    a_hat = adj * d[:, None] * d[None, :]
    h = jnp.maximum(mm(a_hat, mm(x, params["w1"].T)) + params["b1"], 0.0)
    return mm(a_hat, mm(h, params["w2"].T)) + params["b2"]


if __name__ == "__main__":
    key = jax.random.PRNGKey(0)
    k_doc, k_word, k_param = jax.random.split(key, 3)

    input_dim, hidden_dim = 32, 32
    n_doc, n_word = 8, 8
    n_nodes = n_doc + n_word

    doc_feats = jax.random.normal(k_doc, (n_doc, input_dim), jnp.float32)
    word_feats = jax.random.normal(k_word, (n_word, 300), jnp.float32)

    # simple deterministic symmetric edge list (ring over all nodes)
    src = jnp.arange(n_nodes, dtype=jnp.int32)
    dst = (src + 1) % n_nodes
    edge_index = jnp.stack(
        [jnp.concatenate([src, dst]), jnp.concatenate([dst, src])], axis=0)

    params = init_params(k_param, input_dim, hidden_dim)

    encoder = jax.jit(functools.partial(roberta_graph_encoder, params=params))
    out = encoder(doc_feats, word_feats, edge_index)
    jax.block_until_ready(out)

    assert out.shape == (n_nodes, hidden_dim)
    assert bool(jnp.all(jnp.isfinite(out)))

    ref = _reference(doc_feats, word_feats, edge_index, params)
    max_err = float(jnp.max(jnp.abs(out - ref)))
    # bf16 streamed operands (f32 accumulation + f32 normalization) -> relaxed tol
    assert max_err < 2e-2, f"kernel vs reference max abs error {max_err}"

    print("KERNEL_OK")
</pallas_src>

<mosaic_0001>
module attributes {stable_mosaic.version = 11 : i64} {
  func.func @_proj_kernel(%arg0: i32, %arg1: memref<8x128xbf16, #tpu.memory_space<vmem>>, %arg2: memref<128x128xbf16, #tpu.memory_space<vmem>>, %arg3: memref<8x1xf32, #tpu.memory_space<vmem>>, %arg4: memref<8x128xbf16, #tpu.memory_space<vmem>>) attributes {dimension_semantics = [#tpu.dimension_semantics<parallel>], iteration_bounds = array<i64: 1>, scalar_prefetch = 0 : i64, scratch_operands = 0 : i64, tpu.core_type = #tpu.core_type<tc>, window_params = [{transform_indices = @transform_0, window_bounds = array<i64: 8, 128>}, {pipeline_mode = #tpu.pipeline_mode<synchronous>, transform_indices = @transform_1, window_bounds = array<i64: 128, 128>}, {transform_indices = @transform_2, window_bounds = array<i64: 8, 1>}, {transform_indices = @transform_3, window_bounds = array<i64: 8, 128>}]} {
    %c0 = arith.constant 0 : index
    %c0_0 = arith.constant 0 : index
    %0 = vector.load %arg1[%c0, %c0_0] : memref<8x128xbf16, #tpu.memory_space<vmem>>, vector<8x128xbf16>
    %c0_1 = arith.constant 0 : index
    %c0_2 = arith.constant 0 : index
    %1 = vector.load %arg2[%c0_1, %c0_2] : memref<128x128xbf16, #tpu.memory_space<vmem>>, vector<128x128xbf16>
    %cst = arith.constant dense<0.000000e+00> : vector<8x128xf32>
    %2 = tpu.matmul %0, %1, %cst {dimension_numbers = #tpu.dot_dimension_numbers<[1], [0], [0], [1], [0, 0, 1, 1], [], []>} : vector<8x128xbf16>, vector<128x128xbf16>, vector<8x128xf32> -> vector<8x128xf32>
    %c0_3 = arith.constant 0 : index
    %c0_4 = arith.constant 0 : index
    %3 = vector.load %arg3[%c0_3, %c0_4] : memref<8x1xf32, #tpu.memory_space<vmem>>, vector<8x1xf32>
    %4 = vector.broadcast %3 : vector<8x1xf32> to vector<8x128xf32>
    %5 = arith.mulf %2, %4 : vector<8x128xf32>
    %6 = arith.truncf %5 : vector<8x128xf32> to vector<8x128xbf16>
    %c0_5 = arith.constant 0 : index
    %c0_6 = arith.constant 0 : index
    %7 = vector.load %arg4[%c0_5, %c0_6] : memref<8x128xbf16, #tpu.memory_space<vmem>>, vector<8x128xbf16>
    tpu.vector_store %arg4[%c0_5, %c0_6], %6 {strides = array<i32>} : memref<8x128xbf16, #tpu.memory_space<vmem>>, vector<8x128xbf16>,
    return
  }
  func.func @transform_0(%arg0: i32) -> (i32, i32) {
    %c0_i32 = arith.constant 0 : i32
    %c0_i32_0 = arith.constant 0 : i32
    return %arg0, %c0_i32 : i32, i32
  }
  func.func @transform_1(%arg0: i32) -> (i32, i32) {
    %c0_i32 = arith.constant 0 : i32
    %c0_i32_0 = arith.constant 0 : i32
    %c0_i32_1 = arith.constant 0 : i32
    return %c0_i32, %c0_i32_0 : i32, i32
  }
  func.func @transform_2(%arg0: i32) -> (i32, i32) {
    %c0_i32 = arith.constant 0 : i32
    %c0_i32_0 = arith.constant 0 : i32
    return %arg0, %c0_i32 : i32, i32
  }
  func.func @transform_3(%arg0: i32) -> (i32, i32) {
    %c0_i32 = arith.constant 0 : i32
    %c0_i32_0 = arith.constant 0 : i32
    return %arg0, %c0_i32 : i32, i32
  }
}

module attributes {stable_mosaic.version = 11 : i64} {
  func.func @_proj_kernel(%arg0: i32, %arg1: memref<8x384xbf16, #tpu.memory_space<vmem>>, %arg2: memref<384x128xbf16, #tpu.memory_space<vmem>>, %arg3: memref<8x1xf32, #tpu.memory_space<vmem>>, %arg4: memref<8x128xbf16, #tpu.memory_space<vmem>>) attributes {dimension_semantics = [#tpu.dimension_semantics<parallel>], iteration_bounds = array<i64: 1>, scalar_prefetch = 0 : i64, scratch_operands = 0 : i64, tpu.core_type = #tpu.core_type<tc>, window_params = [{transform_indices = @transform_0, window_bounds = array<i64: 8, 384>}, {pipeline_mode = #tpu.pipeline_mode<synchronous>, transform_indices = @transform_1, window_bounds = array<i64: 384, 128>}, {transform_indices = @transform_2, window_bounds = array<i64: 8, 1>}, {transform_indices = @transform_3, window_bounds = array<i64: 8, 128>}]} {
    %c0 = arith.constant 0 : index
    %c0_0 = arith.constant 0 : index
    %0 = vector.load %arg1[%c0, %c0_0] : memref<8x384xbf16, #tpu.memory_space<vmem>>, vector<8x384xbf16>
    %c0_1 = arith.constant 0 : index
    %c0_2 = arith.constant 0 : index
    %1 = vector.load %arg2[%c0_1, %c0_2] : memref<384x128xbf16, #tpu.memory_space<vmem>>, vector<384x128xbf16>
    %cst = arith.constant dense<0.000000e+00> : vector<8x128xf32>
    %2 = tpu.matmul %0, %1, %cst {dimension_numbers = #tpu.dot_dimension_numbers<[1], [0], [0], [1], [0, 0, 1, 1], [], []>} : vector<8x384xbf16>, vector<384x128xbf16>, vector<8x128xf32> -> vector<8x128xf32>
    %c0_3 = arith.constant 0 : index
    %c0_4 = arith.constant 0 : index
    %3 = vector.load %arg3[%c0_3, %c0_4] : memref<8x1xf32, #tpu.memory_space<vmem>>, vector<8x1xf32>
    %4 = vector.broadcast %3 : vector<8x1xf32> to vector<8x128xf32>
    %5 = arith.mulf %2, %4 : vector<8x128xf32>
    %6 = arith.truncf %5 : vector<8x128xf32> to vector<8x128xbf16>
    %c0_5 = arith.constant 0 : index
    %c0_6 = arith.constant 0 : index
    %7 = vector.load %arg4[%c0_5, %c0_6] : memref<8x128xbf16, #tpu.memory_space<vmem>>, vector<8x128xbf16>
    tpu.vector_store %arg4[%c0_5, %c0_6], %6 {strides = array<i32>} : memref<8x128xbf16, #tpu.memory_space<vmem>>, vector<8x128xbf16>,
    return
  }
  func.func @transform_0(%arg0: i32) -> (i32, i32) {
    %c0_i32 = arith.constant 0 : i32
    %c0_i32_0 = arith.constant 0 : i32
    return %arg0, %c0_i32 : i32, i32
  }
  func.func @transform_1(%arg0: i32) -> (i32, i32) {
    %c0_i32 = arith.constant 0 : i32
    %c0_i32_0 = arith.constant 0 : i32
    %c0_i32_1 = arith.constant 0 : i32
    return %c0_i32, %c0_i32_0 : i32, i32
  }
  func.func @transform_2(%arg0: i32) -> (i32, i32) {
    %c0_i32 = arith.constant 0 : i32
    %c0_i32_0 = arith.constant 0 : i32
    return %arg0, %c0_i32 : i32, i32
  }
  func.func @transform_3(%arg0: i32) -> (i32, i32) {
    %c0_i32 = arith.constant 0 : i32
    %c0_i32_0 = arith.constant 0 : i32
    return %arg0, %c0_i32 : i32, i32
  }
}

module attributes {stable_mosaic.version = 11 : i64} {
  func.func @_gcn_kernel_fused(%arg0: i32, %arg1: i32, %arg2: memref<128x128xi8, #tpu.memory_space<vmem>>, %arg3: memref<128x128xbf16, #tpu.memory_space<vmem>>, %arg4: memref<128x1xf32, #tpu.memory_space<vmem>>, %arg5: memref<1x128xf32, #tpu.memory_space<vmem>>, %arg6: memref<128x128xbf16, #tpu.memory_space<vmem>>, %arg7: memref<128x128xbf16, #tpu.memory_space<vmem>>, %arg8: memref<128x128xf32, #tpu.memory_space<vmem>>) attributes {dimension_semantics = [#tpu.dimension_semantics<parallel>, #tpu.dimension_semantics<arbitrary>], iteration_bounds = array<i64: 1, 1>, scalar_prefetch = 0 : i64, scratch_operands = 1 : i64, tpu.core_type = #tpu.core_type<tc>, window_params = [{transform_indices = @transform_0, window_bounds = array<i64: 128, 128>}, {pipeline_mode = #tpu.pipeline_mode<synchronous>, transform_indices = @transform_1, window_bounds = array<i64: 128, 128>}, {transform_indices = @transform_2, window_bounds = array<i64: 128, 1>}, {pipeline_mode = #tpu.pipeline_mode<synchronous>, transform_indices = @transform_3, window_bounds = array<i64: 1, 128>}, {pipeline_mode = #tpu.pipeline_mode<synchronous>, transform_indices = @transform_4, window_bounds = array<i64: 128, 128>}, {transform_indices = @transform_5, window_bounds = array<i64: 128, 128>}]} {
    %c0_i32 = arith.constant 0 : i32
    %0 = arith.cmpi eq, %arg1, %c0_i32 : i32
    %1 = arith.extui %0 : i1 to i32
    %c0_i32_0 = arith.constant 0 : i32
    %2 = arith.cmpi ne, %1, %c0_i32_0 : i32
    scf.if %2 {
      %cst_9 = arith.constant 0.000000e+00 : f32
      %17 = vector.broadcast %cst_9 : f32 to vector<128x128xf32>
      %c0_10 = arith.constant 0 : index
      %c0_11 = arith.constant 0 : index
      %18 = vector.load %arg8[%c0_10, %c0_11] : memref<128x128xf32, #tpu.memory_space<vmem>>, vector<128x128xf32>
      tpu.vector_store %arg8[%c0_10, %c0_11], %17 {strides = array<i32>} : memref<128x128xf32, #tpu.memory_space<vmem>>, vector<128x128xf32>,
    } else {
    }
    %c0 = arith.constant 0 : index
    %c0_1 = arith.constant 0 : index
    %3 = vector.load %arg2[%c0, %c0_1] : memref<128x128xi8, #tpu.memory_space<vmem>>, vector<128x128xi8>
    %4 = arith.sitofp %3 : vector<128x128xi8> to vector<128x128xf32>
    %5 = arith.truncf %4 : vector<128x128xf32> to vector<128x128xbf16>
    %c128_i32 = arith.constant 128 : i32
    %6 = arith.muli %arg1, %c128_i32 : i32
    %7 = tpu.assume_multiple %6, 128 : i32
    %8 = arith.index_cast %7 : i32 to index
    %c0_2 = arith.constant 0 : index
    %9 = vector.load %arg3[%8, %c0_2] : memref<128x128xbf16, #tpu.memory_space<vmem>>, vector<128x128xbf16>
    %c0_3 = arith.constant 0 : index
    %c0_4 = arith.constant 0 : index
    %10 = vector.load %arg8[%c0_3, %c0_4] : memref<128x128xf32, #tpu.memory_space<vmem>>, vector<128x128xf32>
    %cst = arith.constant dense<0.000000e+00> : vector<128x128xf32>
    %11 = tpu.matmul %5, %9, %cst {dimension_numbers = #tpu.dot_dimension_numbers<[1], [0], [0], [1], [0, 0, 1, 1], [], []>} : vector<128x128xbf16>, vector<128x128xbf16>, vector<128x128xf32> -> vector<128x128xf32>
    %12 = arith.addf %10, %11 : vector<128x128xf32>
    %c0_5 = arith.constant 0 : index
    %c0_6 = arith.constant 0 : index
    %13 = vector.load %arg8[%c0_5, %c0_6] : memref<128x128xf32, #tpu.memory_space<vmem>>, vector<128x128xf32>
    tpu.vector_store %arg8[%c0_5, %c0_6], %12 {strides = array<i32>} : memref<128x128xf32, #tpu.memory_space<vmem>>, vector<128x128xf32>,
    %c0_i32_7 = arith.constant 0 : i32
    %14 = arith.cmpi eq, %arg1, %c0_i32_7 : i32
    %15 = arith.extui %14 : i1 to i32
    %c0_i32_8 = arith.constant 0 : i32
    %16 = arith.cmpi ne, %15, %c0_i32_8 : i32
    scf.if %16 {
      %c0_9 = arith.constant 0 : index
      %c0_10 = arith.constant 0 : index
      %17 = vector.load %arg4[%c0_9, %c0_10] : memref<128x1xf32, #tpu.memory_space<vmem>>, vector<128x1xf32>
      %c0_11 = arith.constant 0 : index
      %c0_12 = arith.constant 0 : index
      %18 = vector.load %arg8[%c0_11, %c0_12] : memref<128x128xf32, #tpu.memory_space<vmem>>, vector<128x128xf32>
      %19 = vector.broadcast %17 : vector<128x1xf32> to vector<128x128xf32>
      %20 = arith.mulf %18, %19 : vector<128x128xf32>
      %c0_13 = arith.constant 0 : index
      %c0_14 = arith.constant 0 : index
      %21 = vector.load %arg5[%c0_13, %c0_14] : memref<1x128xf32, #tpu.memory_space<vmem>>, vector<1x128xf32>
      %22 = vector.broadcast %21 : vector<1x128xf32> to vector<128x128xf32>
      %23 = arith.addf %20, %22 : vector<128x128xf32>
      %cst_15 = arith.constant 0.000000e+00 : f32
      %24 = vector.broadcast %cst_15 : f32 to vector<128x128xf32>
      %25 = arith.maximumf %23, %24 : vector<128x128xf32>
      %26 = arith.truncf %25 : vector<128x128xf32> to vector<128x128xbf16>
      %c0_16 = arith.constant 0 : index
      %c0_17 = arith.constant 0 : index
      %27 = vector.load %arg6[%c0_16, %c0_17] : memref<128x128xbf16, #tpu.memory_space<vmem>>, vector<128x128xbf16>
      %cst_18 = arith.constant dense<0.000000e+00> : vector<128x128xf32>
      %28 = tpu.matmul %26, %27, %cst_18 {dimension_numbers = #tpu.dot_dimension_numbers<[1], [0], [0], [1], [0, 0, 1, 1], [], []>} : vector<128x128xbf16>, vector<128x128xbf16>, vector<128x128xf32> -> vector<128x128xf32>
      %29 = vector.broadcast %17 : vector<128x1xf32> to vector<128x128xf32>
      %30 = arith.mulf %28, %29 : vector<128x128xf32>
      %31 = arith.truncf %30 : vector<128x128xf32> to vector<128x128xbf16>
      %c0_19 = arith.constant 0 : index
      %c0_20 = arith.constant 0 : index
      %32 = vector.load %arg7[%c0_19, %c0_20] : memref<128x128xbf16, #tpu.memory_space<vmem>>, vector<128x128xbf16>
      tpu.vector_store %arg7[%c0_19, %c0_20], %31 {strides = array<i32>} : memref<128x128xbf16, #tpu.memory_space<vmem>>, vector<128x128xbf16>,
    } else {
    }
    return
  }
  func.func @transform_0(%arg0: i32, %arg1: i32) -> (i32, i32) {
    %c0_i32 = arith.constant 0 : i32
    return %arg0, %arg1 : i32, i32
  }
  func.func @transform_1(%arg0: i32, %arg1: i32) -> (i32, i32) {
    %c0_i32 = arith.constant 0 : i32
    %c0_i32_0 = arith.constant 0 : i32
    %c0_i32_1 = arith.constant 0 : i32
    return %c0_i32, %c0_i32_0 : i32, i32
  }
  func.func @transform_2(%arg0: i32, %arg1: i32) -> (i32, i32) {
    %c0_i32 = arith.constant 0 : i32
    %c0_i32_0 = arith.constant 0 : i32
    return %arg0, %c0_i32 : i32, i32
  }
  func.func @transform_3(%arg0: i32, %arg1: i32) -> (i32, i32) {
    %c0_i32 = arith.constant 0 : i32
    %c0_i32_0 = arith.constant 0 : i32
    %c0_i32_1 = arith.constant 0 : i32
    return %c0_i32, %c0_i32_0 : i32, i32
  }
  func.func @transform_4(%arg0: i32, %arg1: i32) -> (i32, i32) {
    %c0_i32 = arith.constant 0 : i32
    %c0_i32_0 = arith.constant 0 : i32
    %c0_i32_1 = arith.constant 0 : i32
    return %c0_i32, %c0_i32_0 : i32, i32
  }
  func.func @transform_5(%arg0: i32, %arg1: i32) -> (i32, i32) {
    %c0_i32 = arith.constant 0 : i32
    %c0_i32_0 = arith.constant 0 : i32
    return %arg0, %c0_i32 : i32, i32
  }
}

module attributes {stable_mosaic.version = 11 : i64} {
  func.func @_gcn_kernel_plain(%arg0: i32, %arg1: i32, %arg2: memref<128x128xi8, #tpu.memory_space<vmem>>, %arg3: memref<128x128xbf16, #tpu.memory_space<vmem>>, %arg4: memref<128x1xf32, #tpu.memory_space<vmem>>, %arg5: memref<1x128xf32, #tpu.memory_space<vmem>>, %arg6: memref<128x128xf32, #tpu.memory_space<vmem>>, %arg7: memref<128x128xf32, #tpu.memory_space<vmem>>) attributes {dimension_semantics = [#tpu.dimension_semantics<parallel>, #tpu.dimension_semantics<arbitrary>], iteration_bounds = array<i64: 1, 1>, scalar_prefetch = 0 : i64, scratch_operands = 1 : i64, tpu.core_type = #tpu.core_type<tc>, window_params = [{transform_indices = @transform_0, window_bounds = array<i64: 128, 128>}, {pipeline_mode = #tpu.pipeline_mode<synchronous>, transform_indices = @transform_1, window_bounds = array<i64: 128, 128>}, {transform_indices = @transform_2, window_bounds = array<i64: 128, 1>}, {pipeline_mode = #tpu.pipeline_mode<synchronous>, transform_indices = @transform_3, window_bounds = array<i64: 1, 128>}, {transform_indices = @transform_4, window_bounds = array<i64: 128, 128>}]} {
    %c0_i32 = arith.constant 0 : i32
    %0 = arith.cmpi eq, %arg1, %c0_i32 : i32
    %1 = arith.extui %0 : i1 to i32
    %c0_i32_0 = arith.constant 0 : i32
    %2 = arith.cmpi ne, %1, %c0_i32_0 : i32
    scf.if %2 {
      %cst_9 = arith.constant 0.000000e+00 : f32
      %17 = vector.broadcast %cst_9 : f32 to vector<128x128xf32>
      %c0_10 = arith.constant 0 : index
      %c0_11 = arith.constant 0 : index
      %18 = vector.load %arg7[%c0_10, %c0_11] : memref<128x128xf32, #tpu.memory_space<vmem>>, vector<128x128xf32>
      tpu.vector_store %arg7[%c0_10, %c0_11], %17 {strides = array<i32>} : memref<128x128xf32, #tpu.memory_space<vmem>>, vector<128x128xf32>,
    } else {
    }
    %c0 = arith.constant 0 : index
    %c0_1 = arith.constant 0 : index
    %3 = vector.load %arg2[%c0, %c0_1] : memref<128x128xi8, #tpu.memory_space<vmem>>, vector<128x128xi8>
    %4 = arith.sitofp %3 : vector<128x128xi8> to vector<128x128xf32>
    %5 = arith.truncf %4 : vector<128x128xf32> to vector<128x128xbf16>
    %c128_i32 = arith.constant 128 : i32
    %6 = arith.muli %arg1, %c128_i32 : i32
    %7 = tpu.assume_multiple %6, 128 : i32
    %8 = arith.index_cast %7 : i32 to index
    %c0_2 = arith.constant 0 : index
    %9 = vector.load %arg3[%8, %c0_2] : memref<128x128xbf16, #tpu.memory_space<vmem>>, vector<128x128xbf16>
    %c0_3 = arith.constant 0 : index
    %c0_4 = arith.constant 0 : index
    %10 = vector.load %arg7[%c0_3, %c0_4] : memref<128x128xf32, #tpu.memory_space<vmem>>, vector<128x128xf32>
    %cst = arith.constant dense<0.000000e+00> : vector<128x128xf32>
    %11 = tpu.matmul %5, %9, %cst {dimension_numbers = #tpu.dot_dimension_numbers<[1], [0], [0], [1], [0, 0, 1, 1], [], []>} : vector<128x128xbf16>, vector<128x128xbf16>, vector<128x128xf32> -> vector<128x128xf32>
    %12 = arith.addf %10, %11 : vector<128x128xf32>
    %c0_5 = arith.constant 0 : index
    %c0_6 = arith.constant 0 : index
    %13 = vector.load %arg7[%c0_5, %c0_6] : memref<128x128xf32, #tpu.memory_space<vmem>>, vector<128x128xf32>
    tpu.vector_store %arg7[%c0_5, %c0_6], %12 {strides = array<i32>} : memref<128x128xf32, #tpu.memory_space<vmem>>, vector<128x128xf32>,
    %c0_i32_7 = arith.constant 0 : i32
    %14 = arith.cmpi eq, %arg1, %c0_i32_7 : i32
    %15 = arith.extui %14 : i1 to i32
    %c0_i32_8 = arith.constant 0 : i32
    %16 = arith.cmpi ne, %15, %c0_i32_8 : i32
    scf.if %16 {
      %c0_9 = arith.constant 0 : index
      %c0_10 = arith.constant 0 : index
      %17 = vector.load %arg7[%c0_9, %c0_10] : memref<128x128xf32, #tpu.memory_space<vmem>>, vector<128x128xf32>
      %c0_11 = arith.constant 0 : index
      %c0_12 = arith.constant 0 : index
      %18 = vector.load %arg4[%c0_11, %c0_12] : memref<128x1xf32, #tpu.memory_space<vmem>>, vector<128x1xf32>
      %19 = vector.broadcast %18 : vector<128x1xf32> to vector<128x128xf32>
      %20 = arith.mulf %17, %19 : vector<128x128xf32>
      %c0_13 = arith.constant 0 : index
      %c0_14 = arith.constant 0 : index
      %21 = vector.load %arg5[%c0_13, %c0_14] : memref<1x128xf32, #tpu.memory_space<vmem>>, vector<1x128xf32>
      %22 = vector.broadcast %21 : vector<1x128xf32> to vector<128x128xf32>
      %23 = arith.addf %20, %22 : vector<128x128xf32>
      %c0_15 = arith.constant 0 : index
      %c0_16 = arith.constant 0 : index
      %24 = vector.load %arg6[%c0_15, %c0_16] : memref<128x128xf32, #tpu.memory_space<vmem>>, vector<128x128xf32>
      tpu.vector_store %arg6[%c0_15, %c0_16], %23 {strides = array<i32>} : memref<128x128xf32, #tpu.memory_space<vmem>>, vector<128x128xf32>,
    } else {
    }
    return
  }
  func.func @transform_0(%arg0: i32, %arg1: i32) -> (i32, i32) {
    %c0_i32 = arith.constant 0 : i32
    return %arg0, %arg1 : i32, i32
  }
  func.func @transform_1(%arg0: i32, %arg1: i32) -> (i32, i32) {
    %c0_i32 = arith.constant 0 : i32
    %c0_i32_0 = arith.constant 0 : i32
    %c0_i32_1 = arith.constant 0 : i32
    return %c0_i32, %c0_i32_0 : i32, i32
  }
  func.func @transform_2(%arg0: i32, %arg1: i32) -> (i32, i32) {
    %c0_i32 = arith.constant 0 : i32
    %c0_i32_0 = arith.constant 0 : i32
    return %arg0, %c0_i32 : i32, i32
  }
  func.func @transform_3(%arg0: i32, %arg1: i32) -> (i32, i32) {
    %c0_i32 = arith.constant 0 : i32
    %c0_i32_0 = arith.constant 0 : i32
    %c0_i32_1 = arith.constant 0 : i32
    return %c0_i32, %c0_i32_0 : i32, i32
  }
  func.func @transform_4(%arg0: i32, %arg1: i32) -> (i32, i32) {
    %c0_i32 = arith.constant 0 : i32
    %c0_i32_0 = arith.constant 0 : i32
    return %arg0, %c0_i32 : i32, i32
  }
}

</mosaic_0001>

<llo_original>
// kernel: roberta_graph_encoder.4
$region0: #{roberta_graph_encoder.4}
  #allocation0 [shape = 'u32[]', space=smem, size = 0x4, offset = 0x4, fixed_abs, tag = 'smem constant byte address 0x4 - core index']
  #allocation1 [shape = 'u32[144,128]{1,0:T(1,128)}', space=vmem, size = 0x12000, scoped, tag = 'internal scratch']
  %s0 = inlined_call_operand.vmem [shape: bf16[8,128], index: 0, kind: input, shape index: {}]
  %s1 = inlined_call_operand.vmem [shape: bf16[128,128], index: 1, kind: input, shape index: {}]
  %s2 = inlined_call_operand.vmem [shape: f32[8,1], index: 2, kind: input, shape index: {}]
  %s3 = inlined_call_operand.vmem [shape: bf16[8,128], index: 3, kind: output, shape index: {}]
  %s4 = sld [smem:[#allocation0]]
  $region22: #{roberta_graph_encoder.4} parent=0
    _
  %s6 = ssub.s32 1, %s4
  %s7 = scalar_select 0, %s6, %s4
  // Predicated region
  $region2: #{roberta_graph_encoder.4} parent=0 // pred_check
    _
  $region3: #{roberta_graph_encoder.4} parent=0 // pred_check_branch
    %9 = sbr.rel (0) target = $region5
  $region4: #{roberta_graph_encoder.4} parent=0 // pred_region
    _
  $region5: #{roberta_graph_encoder.4} parent=0 // pred_fallthru
    _
  // Predicated region
  $region6: #{roberta_graph_encoder.4} parent=0 // pred_check
    _
  $region7: #{roberta_graph_encoder.4} parent=0 // pred_check_branch
    %11 = sbr.rel (0) target = $region9
  $region8: #{roberta_graph_encoder.4} parent=0 // pred_region
    _
  $region9: #{roberta_graph_encoder.4} parent=0 // pred_fallthru
    _
  // Predicated region
  $region10: #{roberta_graph_encoder.4} parent=0 // pred_check
    _
  $region11: #{roberta_graph_encoder.4} parent=0 // pred_check_branch
    %13 = sbr.rel (0) target = $region13
  $region12: #{roberta_graph_encoder.4} parent=0 // pred_region
    _
  $region13: #{roberta_graph_encoder.4} parent=0 // pred_fallthru
    _
  %v15 = vld [vmem:[%s0] sm:$0xf]
  %v16 = vld [vmem:[%s1] sm:$0xf]
  %v17 = vld [vmem:[%s1 + $0x4] sm:$0xf]
  %v18 = vld [vmem:[%s1 + $0x8] sm:$0xf]
  %v19 = vld [vmem:[%s1 + $0xc] sm:$0xf]
  %v20 = vld [vmem:[%s1 + $0x10] sm:$0xf]
  %v21 = vld [vmem:[%s1 + $0x14] sm:$0xf]
  %v22 = vld [vmem:[%s1 + $0x18] sm:$0xf]
  %v23 = vld [vmem:[%s1 + $0x1c] sm:$0xf]
  %v24 = vld [vmem:[%s1 + $0x20] sm:$0xf]
  %v25 = vld [vmem:[%s1 + $0x24] sm:$0xf]
  %v26 = vld [vmem:[%s1 + $0x28] sm:$0xf]
  %v27 = vld [vmem:[%s1 + $0x2c] sm:$0xf]
  %v28 = vld [vmem:[%s1 + $0x30] sm:$0xf]
  %v29 = vld [vmem:[%s1 + $0x34] sm:$0xf]
  %v30 = vld [vmem:[%s1 + $0x38] sm:$0xf]
  %v31 = vld [vmem:[%s1 + $0x3c] sm:$0xf]
  %v48 = vunpack.c.l.b16 %v16
  %v49 = vunpack.c.l.b16 %v17
  %v50 = vunpack.c.l.b16 %v18
  %v51 = vunpack.c.l.b16 %v19
  %v52 = vunpack.c.l.b16 %v20
  %v53 = vunpack.c.l.b16 %v21
  %v54 = vunpack.c.l.b16 %v22
  %v55 = vunpack.c.l.b16 %v23
  %v56 = vunpack.c.l.b16 %v24
  %v57 = vunpack.c.l.b16 %v25
  %v58 = vunpack.c.l.b16 %v26
  %v59 = vunpack.c.l.b16 %v27
  %v60 = vunpack.c.l.b16 %v28
  %v61 = vunpack.c.l.b16 %v29
  %v62 = vunpack.c.l.b16 %v30
  %v63 = vunpack.c.l.b16 %v31
  %v64 = vpack.c.b16 %v49, %v48
  %v65 = vpack.c.b16 %v51, %v50
  %v66 = vpack.c.b16 %v53, %v52
  %v67 = vpack.c.b16 %v55, %v54
  %v68 = vpack.c.b16 %v57, %v56
  %v69 = vpack.c.b16 %v59, %v58
  %v70 = vpack.c.b16 %v61, %v60
  %v71 = vpack.c.b16 %v63, %v62
  %80 = vmatprep.subr.bf16.mxu0 0
  %81 = vmatpush1.bf16.msra.mxu0 %v64
  %82 = vmatprep.subr.bf16.mxu0 0
  %83 = vmatpush1.bf16.msra.mxu0 %v65
  %84 = vmatprep.subr.bf16.mxu0 0
  %85 = vmatpush1.bf16.msra.mxu0 %v66
  %86 = vmatprep.subr.bf16.mxu0 0
  %87 = vmatpush1.bf16.msra.mxu0 %v67
  %88 = vmatprep.subr.bf16.mxu0 0
  %89 = vmatpush1.bf16.msra.mxu0 %v68
  %90 = vmatprep.subr.bf16.mxu0 0
  %91 = vmatpush1.bf16.msra.mxu0 %v69
  %92 = vmatprep.subr.bf16.mxu0 0
  %93 = vmatpush1.bf16.msra.mxu0 %v70
  %94 = vmatprep.subr.bf16.mxu0 0
  %95 = vmatpush1.bf16.msra.mxu0 %v71
  %96 = vmatprep.subr.bf16.mxu0 0
  %97 = vmatpush1.bf16.msra.mxu0 0
  %98 = vmatprep.subr.bf16.mxu0 0
  %99 = vmatpush1.bf16.msra.mxu0 0
  %100 = vmatprep.subr.bf16.mxu0 0
  %101 = vmatpush1.bf16.msra.mxu0 0
  %102 = vmatprep.subr.bf16.mxu0 0
  %103 = vmatpush1.bf16.msra.mxu0 0
  %104 = vmatprep.subr.bf16.mxu0 0
  %105 = vmatpush1.bf16.msra.mxu0 0
  %106 = vmatprep.subr.bf16.mxu0 0
  %107 = vmatpush1.bf16.msra.mxu0 0
  %108 = vmatprep.subr.bf16.mxu0 0
  %109 = vmatpush1.bf16.msra.mxu0 0
  %110 = vmatprep.subr.bf16.mxu0 0
  %111 = vmatpush1.bf16.msra.mxu0 0
  %112 = vmatprep.mubr.bf16.mxu0 0
  %113 = vmatmul.mubr.bf16.gmra.mrb[0].mxu0 %v15
  %v114 = vpop.f32.mrb[0].mxu0
  %v115 = vadd.f32 0.0, %v114
  %v116 = vpop.f32.mrb[0].mxu0
  %v117 = vpop.f32.mrb[0].mxu0
  %v118 = vpop.f32.mrb[0].mxu0
  %119 = vdwg.mxu0
  %v120 = vld [vmem:[%s2] sm:$0xff]
  %122 = vset.pattern.permute.xlu0 0
  %123 = vperm.xlu0 %122, %v120
  %v124 = vpop.permute.xlu0 %123
  %v126 = vmul.f32 %v115, %v124
  %v127 = vpack.c.bf16 %v126, %v126
  %128 = vst [vmem:[%s3] sm:$0xf] %v127
  // Predicated region
  $region14: #{roberta_graph_encoder.4} parent=0 // pred_check
    _
  $region15: #{roberta_graph_encoder.4} parent=0 // pred_check_branch
    %130 = sbr.rel (0) target = $region17
  $region16: #{roberta_graph_encoder.4} parent=0 // pred_region
    _
  $region17: #{roberta_graph_encoder.4} parent=0 // pred_fallthru
    _
  // Predicated region
  $region18: #{roberta_graph_encoder.4} parent=0 // pred_check
    _
  $region19: #{roberta_graph_encoder.4} parent=0 // pred_check_branch
    %132 = sbr.rel (0) target = $region21
  $region20: #{roberta_graph_encoder.4} parent=0 // pred_region
    _
  $region21: #{roberta_graph_encoder.4} parent=0 // pred_fallthru
    _

// kernel: roberta_graph_encoder.5
$region0: #{roberta_graph_encoder.5}
  #allocation0 [shape = 'u32[]', space=smem, size = 0x4, offset = 0x4, fixed_abs, tag = 'smem constant byte address 0x4 - core index']
  #allocation1 [shape = 'u32[144,128]{1,0:T(1,128)}', space=vmem, size = 0x12000, scoped, tag = 'internal scratch']
  %s0 = inlined_call_operand.vmem [shape: bf16[8,384], index: 0, kind: input, shape index: {}]
  %s1 = inlined_call_operand.vmem [shape: bf16[384,128], index: 1, kind: input, shape index: {}]
  %s2 = inlined_call_operand.vmem [shape: f32[8,1], index: 2, kind: input, shape index: {}]
  %s3 = inlined_call_operand.vmem [shape: bf16[8,128], index: 3, kind: output, shape index: {}]
  %s4 = sld [smem:[#allocation0]]
  $region22: #{roberta_graph_encoder.5} parent=0
    _
  %s6 = ssub.s32 1, %s4
  %s7 = scalar_select 0, %s6, %s4
  // Predicated region
  $region2: #{roberta_graph_encoder.5} parent=0 // pred_check
    _
  $region3: #{roberta_graph_encoder.5} parent=0 // pred_check_branch
    %9 = sbr.rel (0) target = $region5
  $region4: #{roberta_graph_encoder.5} parent=0 // pred_region
    _
  $region5: #{roberta_graph_encoder.5} parent=0 // pred_fallthru
    _
  // Predicated region
  $region6: #{roberta_graph_encoder.5} parent=0 // pred_check
    _
  $region7: #{roberta_graph_encoder.5} parent=0 // pred_check_branch
    %11 = sbr.rel (0) target = $region9
  $region8: #{roberta_graph_encoder.5} parent=0 // pred_region
    _
  $region9: #{roberta_graph_encoder.5} parent=0 // pred_fallthru
    _
  // Predicated region
  $region10: #{roberta_graph_encoder.5} parent=0 // pred_check
    _
  $region11: #{roberta_graph_encoder.5} parent=0 // pred_check_branch
    %13 = sbr.rel (0) target = $region13
  $region12: #{roberta_graph_encoder.5} parent=0 // pred_region
    _
  $region13: #{roberta_graph_encoder.5} parent=0 // pred_fallthru
    _
  %v15 = vld [vmem:[%s0] sm:$0xff]
  %v16 = vld [vmem:[%s0 + $0x8] sm:$0xf]
  %v17 = vld [vmem:[%s1] sm:$0xf]
  %v18 = vld [vmem:[%s1 + $0x4] sm:$0xf]
  %v19 = vld [vmem:[%s1 + $0x8] sm:$0xf]
  %v20 = vld [vmem:[%s1 + $0xc] sm:$0xf]
  %v21 = vld [vmem:[%s1 + $0x10] sm:$0xf]
  %v22 = vld [vmem:[%s1 + $0x14] sm:$0xf]
  %v23 = vld [vmem:[%s1 + $0x18] sm:$0xf]
  %v24 = vld [vmem:[%s1 + $0x1c] sm:$0xf]
  %v25 = vld [vmem:[%s1 + $0x20] sm:$0xf]
  %v26 = vld [vmem:[%s1 + $0x24] sm:$0xf]
  %v27 = vld [vmem:[%s1 + $0x28] sm:$0xf]
  %v28 = vld [vmem:[%s1 + $0x2c] sm:$0xf]
  %v29 = vld [vmem:[%s1 + $0x30] sm:$0xf]
  %v30 = vld [vmem:[%s1 + $0x34] sm:$0xf]
  %v31 = vld [vmem:[%s1 + $0x38] sm:$0xf]
  %v32 = vld [vmem:[%s1 + $0x3c] sm:$0xf]
  %v33 = vld [vmem:[%s1 + $0x40] sm:$0xf]
  %v34 = vld [vmem:[%s1 + $0x44] sm:$0xf]
  %v35 = vld [vmem:[%s1 + $0x48] sm:$0xf]
  %v36 = vld [vmem:[%s1 + $0x4c] sm:$0xf]
  %v37 = vld [vmem:[%s1 + $0x50] sm:$0xf]
  %v38 = vld [vmem:[%s1 + $0x54] sm:$0xf]
  %v39 = vld [vmem:[%s1 + $0x58] sm:$0xf]
  %v40 = vld [vmem:[%s1 + $0x5c] sm:$0xf]
  %v41 = vld [vmem:[%s1 + $0x60] sm:$0xf]
  %v42 = vld [vmem:[%s1 + $0x64] sm:$0xf]
  %v43 = vld [vmem:[%s1 + $0x68] sm:$0xf]
  %v44 = vld [vmem:[%s1 + $0x6c] sm:$0xf]
  %v45 = vld [vmem:[%s1 + $0x70] sm:$0xf]
  %v46 = vld [vmem:[%s1 + $0x74] sm:$0xf]
  %v47 = vld [vmem:[%s1 + $0x78] sm:$0xf]
  %v48 = vld [vmem:[%s1 + $0x7c] sm:$0xf]
  %v49 = vld [vmem:[%s1 + $0x80] sm:$0xf]
  %v50 = vld [vmem:[%s1 + $0x84] sm:$0xf]
  %v51 = vld [vmem:[%s1 + $0x88] sm:$0xf]
  %v52 = vld [vmem:[%s1 + $0x8c] sm:$0xf]
  %v53 = vld [vmem:[%s1 + $0x90] sm:$0xf]
  %v54 = vld [vmem:[%s1 + $0x94] sm:$0xf]
  %v55 = vld [vmem:[%s1 + $0x98] sm:$0xf]
  %v56 = vld [vmem:[%s1 + $0x9c] sm:$0xf]
  %v57 = vld [vmem:[%s1 + $0xa0] sm:$0xf]
  %v58 = vld [vmem:[%s1 + $0xa4] sm:$0xf]
  %v59 = vld [vmem:[%s1 + $0xa8] sm:$0xf]
  %v60 = vld [vmem:[%s1 + $0xac] sm:$0xf]
  %v61 = vld [vmem:[%s1 + $0xb0] sm:$0xf]
  %v62 = vld [vmem:[%s1 + $0xb4] sm:$0xf]
  %v63 = vld [vmem:[%s1 + $0xb8] sm:$0xf]
  %v64 = vld [vmem:[%s1 + $0xbc] sm:$0xf]
  %v67 = vunpack.c.l.b16 %v15
  %v68 = vunpack.c.h.b16 %v15
  %v69 = vunpack.c.l.b16 %v16
  %v70 = vpack.c.b16 %v67, %v67
  %v71 = vpack.c.b16 %v68, %v68
  %v72 = vpack.c.b16 %v69, %v69
  %v124 = vunpack.c.l.b16 %v17
  %v125 = vunpack.c.l.b16 %v18
  %v126 = vunpack.c.l.b16 %v19
  %v127 = vunpack.c.l.b16 %v20
  %v128 = vunpack.c.l.b16 %v21
  %v129 = vunpack.c.l.b16 %v22
  %v130 = vunpack.c.l.b16 %v23
  %v131 = vunpack.c.l.b16 %v24
  %v132 = vunpack.c.l.b16 %v25
  %v133 = vunpack.c.l.b16 %v26
  %v134 = vunpack.c.l.b16 %v27
  %v135 = vunpack.c.l.b16 %v28
  %v136 = vunpack.c.l.b16 %v29
  %v137 = vunpack.c.l.b16 %v30
  %v138 = vunpack.c.l.b16 %v31
  %v139 = vunpack.c.l.b16 %v32
  %v140 = vunpack.c.l.b16 %v33
  %v141 = vunpack.c.l.b16 %v34
  %v142 = vunpack.c.l.b16 %v35
  %v143 = vunpack.c.l.b16 %v36
  %v144 = vunpack.c.l.b16 %v37
  %v145 = vunpack.c.l.b16 %v38
  %v146 = vunpack.c.l.b16 %v39
  %v147 = vunpack.c.l.b16 %v40
  %v148 = vunpack.c.l.b16 %v41
  %v149 = vunpack.c.l.b16 %v42
  %v150 = vunpack.c.l.b16 %v43
  %v151 = vunpack.c.l.b16 %v44
  %v152 = vunpack.c.l.b16 %v45
  %v153 = vunpack.c.l.b16 %v46
  %v154 = vunpack.c.l.b16 %v47
  %v155 = vunpack.c.l.b16 %v48
  %v156 = vunpack.c.l.b16 %v49
  %v157 = vunpack.c.l.b16 %v50
  %v158 = vunpack.c.l.b16 %v51
  %v159 = vunpack.c.l.b16 %v52
  %v160 = vunpack.c.l.b16 %v53
  %v161 = vunpack.c.l.b16 %v54
  %v162 = vunpack.c.l.b16 %v55
  %v163 = vunpack.c.l.b16 %v56
  %v164 = vunpack.c.l.b16 %v57
  %v165 = vunpack.c.l.b16 %v58
  %v166 = vunpack.c.l.b16 %v59
  %v167 = vunpack.c.l.b16 %v60
  %v168 = vunpack.c.l.b16 %v61
  %v169 = vunpack.c.l.b16 %v62
  %v170 = vunpack.c.l.b16 %v63
  %v171 = vunpack.c.l.b16 %v64
  %v172 = vpack.c.b16 %v125, %v124
  %v173 = vpack.c.b16 %v127, %v126
  %v174 = vpack.c.b16 %v129, %v128
  %v175 = vpack.c.b16 %v131, %v130
  %v176 = vpack.c.b16 %v133, %v132
  %v177 = vpack.c.b16 %v135, %v134
  %v178 = vpack.c.b16 %v137, %v136
  %v179 = vpack.c.b16 %v139, %v138
  %v180 = vpack.c.b16 %v141, %v140
  %v181 = vpack.c.b16 %v143, %v142
  %v182 = vpack.c.b16 %v145, %v144
  %v183 = vpack.c.b16 %v147, %v146
  %v184 = vpack.c.b16 %v149, %v148
  %v185 = vpack.c.b16 %v151, %v150
  %v186 = vpack.c.b16 %v153, %v152
  %v187 = vpack.c.b16 %v155, %v154
  %v188 = vpack.c.b16 %v157, %v156
  %v189 = vpack.c.b16 %v159, %v158
  %v190 = vpack.c.b16 %v161, %v160
  %v191 = vpack.c.b16 %v163, %v162
  %v192 = vpack.c.b16 %v165, %v164
  %v193 = vpack.c.b16 %v167, %v166
  %v194 = vpack.c.b16 %v169, %v168
  %v195 = vpack.c.b16 %v171, %v170
  %220 = vmatprep.subr.bf16.mxu0 0
  %221 = vmatpush1.bf16.msra.mxu0 %v172
  %222 = vmatprep.subr.bf16.mxu0 0
  %223 = vmatpush1.bf16.msra.mxu0 %v173
  %224 = vmatprep.subr.bf16.mxu0 0
  %225 = vmatpush1.bf16.msra.mxu0 %v174
  %226 = vmatprep.subr.bf16.mxu0 0
  %227 = vmatpush1.bf16.msra.mxu0 %v175
  %228 = vmatprep.subr.bf16.mxu0 0
  %229 = vmatpush1.bf16.msra.mxu0 %v176
  %230 = vmatprep.subr.bf16.mxu0 0
  %231 = vmatpush1.bf16.msra.mxu0 %v177
  %232 = vmatprep.subr.bf16.mxu0 0
  %233 = vmatpush1.bf16.msra.mxu0 %v178
  %234 = vmatprep.subr.bf16.mxu0 0
  %235 = vmatpush1.bf16.msra.mxu0 %v179
  %236 = vmatprep.subr.bf16.mxu0 0
  %237 = vmatpush1.bf16.msra.mxu0 %v180
  %238 = vmatprep.subr.bf16.mxu0 0
  %239 = vmatpush1.bf16.msra.mxu0 %v181
  %240 = vmatprep.subr.bf16.mxu0 0
  %241 = vmatpush1.bf16.msra.mxu0 %v182
  %242 = vmatprep.subr.bf16.mxu0 0
  %243 = vmatpush1.bf16.msra.mxu0 %v183
  %244 = vmatprep.subr.bf16.mxu0 0
  %245 = vmatpush1.bf16.msra.mxu0 %v184
  %246 = vmatprep.subr.bf16.mxu0 0
  %247 = vmatpush1.bf16.msra.mxu0 %v185
  %248 = vmatprep.subr.bf16.mxu0 0
  %249 = vmatpush1.bf16.msra.mxu0 %v186
  %250 = vmatprep.subr.bf16.mxu0 0
  %251 = vmatpush1.bf16.msra.mxu0 %v187
  %252 = vmatprep.mubr.bf16.mxu0 %v71
  %253 = vmatmul.mubr.bf16.gmra.mrb[0].mxu0 %v70
  %v254 = vpop.f32.mrb[0].mxu0
  %v255 = vadd.f32 0.0, %v254
  %v256 = vpop.f32.mrb[0].mxu0
  %v257 = vpop.f32.mrb[0].mxu0
  %v258 = vpop.f32.mrb[0].mxu0
  %259 = vdwg.mxu0
  %260 = vmatprep.subr.bf16.mxu0 0
  %261 = vmatpush1.bf16.msra.mxu0 %v188
  %262 = vmatprep.subr.bf16.mxu0 0
  %263 = vmatpush1.bf16.msra.mxu0 %v189
  %264 = vmatprep.subr.bf16.mxu0 0
  %265 = vmatpush1.bf16.msra.mxu0 %v190
  %266 = vmatprep.subr.bf16.mxu0 0
  %267 = vmatpush1.bf16.msra.mxu0 %v191
  %268 = vmatprep.subr.bf16.mxu0 0
  %269 = vmatpush1.bf16.msra.mxu0 %v192
  %270 = vmatprep.subr.bf16.mxu0 0
  %271 = vmatpush1.bf16.msra.mxu0 %v193
  %272 = vmatprep.subr.bf16.mxu0 0
  %273 = vmatpush1.bf16.msra.mxu0 %v194
  %274 = vmatprep.subr.bf16.mxu0 0
  %275 = vmatpush1.bf16.msra.mxu0 %v195
  %276 = vmatprep.subr.bf16.mxu0 0
  %277 = vmatpush1.bf16.msra.mxu0 0
  %278 = vmatprep.subr.bf16.mxu0 0
  %279 = vmatpush1.bf16.msra.mxu0 0
  %280 = vmatprep.subr.bf16.mxu0 0
  %281 = vmatpush1.bf16.msra.mxu0 0
  %282 = vmatprep.subr.bf16.mxu0 0
  %283 = vmatpush1.bf16.msra.mxu0 0
  %284 = vmatprep.subr.bf16.mxu0 0
  %285 = vmatpush1.bf16.msra.mxu0 0
  %286 = vmatprep.subr.bf16.mxu0 0
  %287 = vmatpush1.bf16.msra.mxu0 0
  %288 = vmatprep.subr.bf16.mxu0 0
  %289 = vmatpush1.bf16.msra.mxu0 0
  %290 = vmatprep.subr.bf16.mxu0 0
  %291 = vmatpush1.bf16.msra.mxu0 0
  %292 = vmatprep.mubr.bf16.mxu0 0
  %293 = vmatmul.mubr.bf16.gmra.mrb[0].mxu0 %v72
  %v294 = vpop.f32.mrb[0].mxu0
  %v295 = vadd.f32 %v255, %v294
  %v296 = vpop.f32.mrb[0].mxu0
  %v297 = vpop.f32.mrb[0].mxu0
  %v298 = vpop.f32.mrb[0].mxu0
  %299 = vdwg.mxu0
  %v300 = vld [vmem:[%s2] sm:$0xff]
  %302 = vset.pattern.permute.xlu0 0
  %303 = vperm.xlu0 %302, %v300
  %v304 = vpop.permute.xlu0 %303
  %v306 = vmul.f32 %v295, %v304
  %v307 = vpack.c.bf16 %v306, %v306
  %308 = vst [vmem:[%s3] sm:$0xf] %v307
  // Predicated region
  $region14: #{roberta_graph_encoder.5} parent=0 // pred_check
    _
  $region15: #{roberta_graph_encoder.5} parent=0 // pred_check_branch
    %310 = sbr.rel (0) target = $region17
  $region16: #{roberta_graph_encoder.5} parent=0 // pred_region
    _
  $region17: #{roberta_graph_encoder.5} parent=0 // pred_fallthru
    _
  // Predicated region
  $region18: #{roberta_graph_encoder.5} parent=0 // pred_check
    _
  $region19: #{roberta_graph_encoder.5} parent=0 // pred_check_branch
    %312 = sbr.rel (0) target = $region21
  $region20: #{roberta_graph_encoder.5} parent=0 // pred_region
    _
  $region21: #{roberta_graph_encoder.5} parent=0 // pred_fallthru
    _

// kernel: roberta_graph_encoder.6
$region0: #{roberta_graph_encoder.6}
  #allocation0 [shape = 'u32[]', space=smem, size = 0x4, offset = 0x4, fixed_abs, tag = 'smem constant byte address 0x4 - core index']
  #allocation1 [shape = 'u32[144,128]{1,0:T(1,128)}', space=vmem, size = 0x12000, scoped, tag = 'internal scratch']
  #allocation2 [shape = 'f32[128,128]{1,0:T(8,128)}', space=vmem, size = 0x10000, scoped, tag = 'scratch operand']
  %s0 = inlined_call_operand.vmem [shape: s8[128,128], index: 0, kind: input, shape index: {}]
  %s1 = inlined_call_operand.vmem [shape: bf16[128,128], index: 1, kind: input, shape index: {}]
  %s2 = inlined_call_operand.vmem [shape: f32[128,1], index: 2, kind: input, shape index: {}]
  %s3 = inlined_call_operand.vmem [shape: f32[1,128], index: 3, kind: input, shape index: {}]
  %s4 = inlined_call_operand.vmem [shape: bf16[128,128], index: 4, kind: input, shape index: {}]
  %s5 = inlined_call_operand.vmem [shape: bf16[128,128], index: 5, kind: output, shape index: {}]
  %s6 = sld [smem:[#allocation0]]
  $region38: #{roberta_graph_encoder.6} parent=0
    _
  %s8 = ssub.s32 1, %s6
  %s9 = scalar_select 0, %s8, %s6
  // Predicated region
  $region2: #{roberta_graph_encoder.6} parent=0 // pred_check
    _
  $region3: #{roberta_graph_encoder.6} parent=0 // pred_check_branch
    %11 = sbr.rel (0) target = $region5
  $region4: #{roberta_graph_encoder.6} parent=0 // pred_region
    _
  $region5: #{roberta_graph_encoder.6} parent=0 // pred_fallthru
    _
  // Predicated region
  $region6: #{roberta_graph_encoder.6} parent=0 // pred_check
    _
  $region7: #{roberta_graph_encoder.6} parent=0 // pred_check_branch
    %13 = sbr.rel (0) target = $region9
  $region8: #{roberta_graph_encoder.6} parent=0 // pred_region
    _
  $region9: #{roberta_graph_encoder.6} parent=0 // pred_fallthru
    _
  // Predicated region
  $region10: #{roberta_graph_encoder.6} parent=0 // pred_check
    _
  $region11: #{roberta_graph_encoder.6} parent=0 // pred_check_branch
    %15 = sbr.rel (0) target = $region13
  $region12: #{roberta_graph_encoder.6} parent=0 // pred_region
    _
  $region13: #{roberta_graph_encoder.6} parent=0 // pred_fallthru
    _
  // Predicated region
  $region14: #{roberta_graph_encoder.6} parent=0 // pred_check
    _
  $region15: #{roberta_graph_encoder.6} parent=0 // pred_check_branch
    %17 = sbr.rel (0) target = $region17
  $region16: #{roberta_graph_encoder.6} parent=0 // pred_region
    _
  $region17: #{roberta_graph_encoder.6} parent=0 // pred_fallthru
    _
  // Predicated region
  $region18: #{roberta_graph_encoder.6} parent=0 // pred_check
    _
  $region19: #{roberta_graph_encoder.6} parent=0 // pred_check_branch
    %19 = sbr.rel (0) target = $region21
  $region20: #{roberta_graph_encoder.6} parent=0 // pred_region
    _
  $region21: #{roberta_graph_encoder.6} parent=0 // pred_fallthru
    _
  %p21 = scmp.eq.s32.totalorder 0, 0
  // Predicated region
  $region22: #{roberta_graph_encoder.6} parent=0 // pred_check
    %p22 = pneg %p21
  $region23: #{roberta_graph_encoder.6} parent=0 // pred_check_branch
    %24 = sbr.rel (%p22) target = $region25
  $region24: #{roberta_graph_encoder.6} parent=0 // pred_region
    %25 = vst [vmem:[#allocation2] sm:$0xff] 0.0
    %26 = vst [vmem:[#allocation2 + $0x8] sm:$0xff] 0.0
    %27 = vst [vmem:[#allocation2 + $0x10] sm:$0xff] 0.0
    %28 = vst [vmem:[#allocation2 + $0x18] sm:$0xff] 0.0
    %29 = vst [vmem:[#allocation2 + $0x20] sm:$0xff] 0.0
    %30 = vst [vmem:[#allocation2 + $0x28] sm:$0xff] 0.0
    %31 = vst [vmem:[#allocation2 + $0x30] sm:$0xff] 0.0
    %32 = vst [vmem:[#allocation2 + $0x38] sm:$0xff] 0.0
    %33 = vst [vmem:[#allocation2 + $0x40] sm:$0xff] 0.0
    %34 = vst [vmem:[#allocation2 + $0x48] sm:$0xff] 0.0
    %35 = vst [vmem:[#allocation2 + $0x50] sm:$0xff] 0.0
    %36 = vst [vmem:[#allocation2 + $0x58] sm:$0xff] 0.0
    %37 = vst [vmem:[#allocation2 + $0x60] sm:$0xff] 0.0
    %38 = vst [vmem:[#allocation2 + $0x68] sm:$0xff] 0.0
    %39 = vst [vmem:[#allocation2 + $0x70] sm:$0xff] 0.0
    %40 = vst [vmem:[#allocation2 + $0x78] sm:$0xff] 0.0
  $region25: #{roberta_graph_encoder.6} parent=0 // pred_fallthru
    _
  %v41 = vld [vmem:[%s0] sm:$0x3]
  %v42 = vld [vmem:[%s0 + $0x2] sm:$0x3]
  %v43 = vld [vmem:[%s0 + $0x4] sm:$0x3]
  %v44 = vld [vmem:[%s0 + $0x6] sm:$0x3]
  %v45 = vld [vmem:[%s0 + $0x8] sm:$0x3]
  %v46 = vld [vmem:[%s0 + $0xa] sm:$0x3]
  %v47 = vld [vmem:[%s0 + $0xc] sm:$0x3]
  %v48 = vld [vmem:[%s0 + $0xe] sm:$0x3]
  %v49 = vld [vmem:[%s0 + $0x10] sm:$0x3]
  %v50 = vld [vmem:[%s0 + $0x12] sm:$0x3]
  %v51 = vld [vmem:[%s0 + $0x14] sm:$0x3]
  %v52 = vld [vmem:[%s0 + $0x16] sm:$0x3]
  %v53 = vld [vmem:[%s0 + $0x18] sm:$0x3]
  %v54 = vld [vmem:[%s0 + $0x1a] sm:$0x3]
  %v55 = vld [vmem:[%s0 + $0x1c] sm:$0x3]
  %v56 = vld [vmem:[%s0 + $0x1e] sm:$0x3]
  %v57 = vunpack.c.l.s8.bf16 %v41
  %v58 = vunpack.c.l.s8.bf16 %v42
  %v59 = vunpack.c.l.s8.bf16 %v43
  %v60 = vunpack.c.l.s8.bf16 %v44
  %v61 = vunpack.c.l.s8.bf16 %v45
  %v62 = vunpack.c.l.s8.bf16 %v46
  %v63 = vunpack.c.l.s8.bf16 %v47
  %v64 = vunpack.c.l.s8.bf16 %v48
  %v65 = vunpack.c.l.s8.bf16 %v49
  %v66 = vunpack.c.l.s8.bf16 %v50
  %v67 = vunpack.c.l.s8.bf16 %v51
  %v68 = vunpack.c.l.s8.bf16 %v52
  %v69 = vunpack.c.l.s8.bf16 %v53
  %v70 = vunpack.c.l.s8.bf16 %v54
  %v71 = vunpack.c.l.s8.bf16 %v55
  %v72 = vunpack.c.l.s8.bf16 %v56
  %s73 = smul.u32 0, 128
  %s74 = sshra.s32 %s73, 3
  %s75 = sand.u32 %s73, 7
  %s76 = smul.addr %s74, 4
  %s77 = scalar_lea.vmem %s1, %s76
  %v78 = vld [vmem:[%s77] sm:$0xf]
  %v79 = vld [vmem:[%s77 + $0x4] sm:$0xf]
  %v80 = vld [vmem:[%s77 + $0x8] sm:$0xf]
  %v81 = vld [vmem:[%s77 + $0xc] sm:$0xf]
  %v82 = vld [vmem:[%s77 + $0x10] sm:$0xf]
  %v83 = vld [vmem:[%s77 + $0x14] sm:$0xf]
  %v84 = vld [vmem:[%s77 + $0x18] sm:$0xf]
  %v85 = vld [vmem:[%s77 + $0x1c] sm:$0xf]
  %v86 = vld [vmem:[%s77 + $0x20] sm:$0xf]
  %v87 = vld [vmem:[%s77 + $0x24] sm:$0xf]
  %v88 = vld [vmem:[%s77 + $0x28] sm:$0xf]
  %v89 = vld [vmem:[%s77 + $0x2c] sm:$0xf]
  %v90 = vld [vmem:[%s77 + $0x30] sm:$0xf]
  %v91 = vld [vmem:[%s77 + $0x34] sm:$0xf]
  %v92 = vld [vmem:[%s77 + $0x38] sm:$0xf]
  %v93 = vld [vmem:[%s77 + $0x3c] sm:$0xf]
  %v94 = vld [vmem:[#allocation2] sm:$0xff]
  %v95 = vld [vmem:[#allocation2 + $0x8] sm:$0xff]
  %v96 = vld [vmem:[#allocation2 + $0x10] sm:$0xff]
  %v97 = vld [vmem:[#allocation2 + $0x18] sm:$0xff]
  %v98 = vld [vmem:[#allocation2 + $0x20] sm:$0xff]
  %v99 = vld [vmem:[#allocation2 + $0x28] sm:$0xff]
  %v100 = vld [vmem:[#allocation2 + $0x30] sm:$0xff]
  %v101 = vld [vmem:[#allocation2 + $0x38] sm:$0xff]
  %v102 = vld [vmem:[#allocation2 + $0x40] sm:$0xff]
  %v103 = vld [vmem:[#allocation2 + $0x48] sm:$0xff]
  %v104 = vld [vmem:[#allocation2 + $0x50] sm:$0xff]
  %v105 = vld [vmem:[#allocation2 + $0x58] sm:$0xff]
  %v106 = vld [vmem:[#allocation2 + $0x60] sm:$0xff]
  %v107 = vld [vmem:[#allocation2 + $0x68] sm:$0xff]
  %v108 = vld [vmem:[#allocation2 + $0x70] sm:$0xff]
  %v109 = vld [vmem:[#allocation2 + $0x78] sm:$0xff]
  %v126 = vunpack.c.l.b16 %v57
  %v127 = vunpack.c.l.b16 %v58
  %v128 = vunpack.c.l.b16 %v59
  %v129 = vunpack.c.l.b16 %v60
  %v130 = vunpack.c.l.b16 %v61
  %v131 = vunpack.c.l.b16 %v62
  %v132 = vunpack.c.l.b16 %v63
  %v133 = vunpack.c.l.b16 %v64
  %v134 = vunpack.c.l.b16 %v65
  %v135 = vunpack.c.l.b16 %v66
  %v136 = vunpack.c.l.b16 %v67
  %v137 = vunpack.c.l.b16 %v68
  %v138 = vunpack.c.l.b16 %v69
  %v139 = vunpack.c.l.b16 %v70
  %v140 = vunpack.c.l.b16 %v71
  %v141 = vunpack.c.l.b16 %v72
  %v142 = vpack.c.b16 %v127, %v126
  %v143 = vpack.c.b16 %v129, %v128
  %v144 = vpack.c.b16 %v131, %v130
  %v145 = vpack.c.b16 %v133, %v132
  %v146 = vpack.c.b16 %v135, %v134
  %v147 = vpack.c.b16 %v137, %v136
  %v148 = vpack.c.b16 %v139, %v138
  %v149 = vpack.c.b16 %v141, %v140
  %v174 = vunpack.c.l.b16 %v78
  %v175 = vunpack.c.l.b16 %v79
  %v176 = vunpack.c.l.b16 %v80
  %v177 = vunpack.c.l.b16 %v81
  %v178 = vunpack.c.l.b16 %v82
  %v179 = vunpack.c.l.b16 %v83
  %v180 = vunpack.c.l.b16 %v84
  %v181 = vunpack.c.l.b16 %v85
  %v182 = vunpack.c.l.b16 %v86
  %v183 = vunpack.c.l.b16 %v87
  %v184 = vunpack.c.l.b16 %v88
  %v185 = vunpack.c.l.b16 %v89
  %v186 = vunpack.c.l.b16 %v90
  %v187 = vunpack.c.l.b16 %v91
  %v188 = vunpack.c.l.b16 %v92
  %v189 = vunpack.c.l.b16 %v93
  %v190 = vpack.c.b16 %v175, %v174
  %v191 = vpack.c.b16 %v177, %v176
  %v192 = vpack.c.b16 %v179, %v178
  %v193 = vpack.c.b16 %v181, %v180
  %v194 = vpack.c.b16 %v183, %v182
  %v195 = vpack.c.b16 %v185, %v184
  %v196 = vpack.c.b16 %v187, %v186
  %v197 = vpack.c.b16 %v189, %v188
  %206 = vmatprep.subr.bf16.mxu0 0
  %207 = vmatpush1.bf16.msra.mxu0 %v190
  %208 = vmatprep.subr.bf16.mxu0 0
  %209 = vmatpush1.bf16.msra.mxu0 %v191
  %210 = vmatprep.subr.bf16.mxu0 0
  %211 = vmatpush1.bf16.msra.mxu0 %v192
  %212 = vmatprep.subr.bf16.mxu0 0
  %213 = vmatpush1.bf16.msra.mxu0 %v193
  %214 = vmatprep.subr.bf16.mxu0 0
  %215 = vmatpush1.bf16.msra.mxu0 %v194
  %216 = vmatprep.subr.bf16.mxu0 0
  %217 = vmatpush1.bf16.msra.mxu0 %v195
  %218 = vmatprep.subr.bf16.mxu0 0
  %219 = vmatpush1.bf16.msra.mxu0 %v196
  %220 = vmatprep.subr.bf16.mxu0 0
  %221 = vmatpush1.bf16.msra.mxu0 %v197
  %222 = vmatprep.subr.bf16.mxu0 0
  %223 = vmatpush1.bf16.msra.mxu0 0
  %224 = vmatprep.subr.bf16.mxu0 0
  %225 = vmatpush1.bf16.msra.mxu0 0
  %226 = vmatprep.subr.bf16.mxu0 0
  %227 = vmatpush1.bf16.msra.mxu0 0
  %228 = vmatprep.subr.bf16.mxu0 0
  %229 = vmatpush1.bf16.msra.mxu0 0
  %230 = vmatprep.subr.bf16.mxu0 0
  %231 = vmatpush1.bf16.msra.mxu0 0
  %232 = vmatprep.subr.bf16.mxu0 0
  %233 = vmatpush1.bf16.msra.mxu0 0
  %234 = vmatprep.subr.bf16.mxu0 0
  %235 = vmatpush1.bf16.msra.mxu0 0
  %236 = vmatprep.subr.bf16.mxu0 0
  %237 = vmatpush1.bf16.msra.mxu0 0
  %238 = vmatprep.mubr.bf16.mxu0 0
  %239 = vmatmul.mubr.bf16.gmra.mrb[0].mxu0 %v142
  %v240 = vpop.f32.mrb[0].mxu0
  %v241 = vadd.f32 0.0, %v240
  %v242 = vpop.f32.mrb[0].mxu0
  %v243 = vpop.f32.mrb[0].mxu0
  %v244 = vadd.f32 0.0, %v243
  %v245 = vpop.f32.mrb[0].mxu0
  %246 = vmatprep.mubr.bf16.mxu0 0
  %247 = vmatmul.mubr.bf16.gmra.mrb[0].mxu0 %v143
  %v248 = vpop.f32.mrb[0].mxu0
  %v249 = vadd.f32 0.0, %v248
  %v250 = vpop.f32.mrb[0].mxu0
  %v251 = vpop.f32.mrb[0].mxu0
  %v252 = vadd.f32 0.0, %v251
  %v253 = vpop.f32.mrb[0].mxu0
  %254 = vmatprep.mubr.bf16.mxu0 0
  %255 = vmatmul.mubr.bf16.gmra.mrb[0].mxu0 %v144
  %v256 = vpop.f32.mrb[0].mxu0
  %v257 = vadd.f32 0.0, %v256
  %v258 = vpop.f32.mrb[0].mxu0
  %v259 = vpop.f32.mrb[0].mxu0
  %v260 = vadd.f32 0.0, %v259
  %v261 = vpop.f32.mrb[0].mxu0
  %262 = vmatprep.mubr.bf16.mxu0 0
  %263 = vmatmul.mubr.bf16.gmra.mrb[0].mxu0 %v145
  %v264 = vpop.f32.mrb[0].mxu0
  %v265 = vadd.f32 0.0, %v264
  %v266 = vpop.f32.mrb[0].mxu0
  %v267 = vpop.f32.mrb[0].mxu0
  %v268 = vadd.f32 0.0, %v267
  %v269 = vpop.f32.mrb[0].mxu0
  %270 = vmatprep.mubr.bf16.mxu0 0
  %271 = vmatmul.mubr.bf16.gmra.mrb[0].mxu0 %v146
  %v272 = vpop.f32.mrb[0].mxu0
  %v273 = vadd.f32 0.0, %v272
  %v274 = vpop.f32.mrb[0].mxu0
  %v275 = vpop.f32.mrb[0].mxu0
  %v276 = vadd.f32 0.0, %v275
  %v277 = vpop.f32.mrb[0].mxu0
  %278 = vmatprep.mubr.bf16.mxu0 0
  %279 = vmatmul.mubr.bf16.gmra.mrb[0].mxu0 %v147
  %v280 = vpop.f32.mrb[0].mxu0
  %v281 = vadd.f32 0.0, %v280
  %v282 = vpop.f32.mrb[0].mxu0
  %v283 = vpop.f32.mrb[0].mxu0
  %v284 = vadd.f32 0.0, %v283
  %v285 = vpop.f32.mrb[0].mxu0
  %286 = vmatprep.mubr.bf16.mxu0 0
  %287 = vmatmul.mubr.bf16.gmra.mrb[0].mxu0 %v148
  %v288 = vpop.f32.mrb[0].mxu0
  %v289 = vadd.f32 0.0, %v288
  %v290 = vpop.f32.mrb[0].mxu0
  %v291 = vpop.f32.mrb[0].mxu0
  %v292 = vadd.f32 0.0, %v291
  %v293 = vpop.f32.mrb[0].mxu0
  %294 = vmatprep.mubr.bf16.mxu0 0
  %295 = vmatmul.mubr.bf16.gmra.mrb[0].mxu0 %v149
  %v296 = vpop.f32.mrb[0].mxu0
  %v297 = vadd.f32 0.0, %v296
  %v298 = vpop.f32.mrb[0].mxu0
  %v299 = vpop.f32.mrb[0].mxu0
  %v300 = vadd.f32 0.0, %v299
  %v301 = vpop.f32.mrb[0].mxu0
  %302 = vdwg.mxu0
  %v303 = vadd.f32 %v94, %v241
  %v304 = vadd.f32 %v95, %v244
  %v305 = vadd.f32 %v96, %v249
  %v306 = vadd.f32 %v97, %v252
  %v307 = vadd.f32 %v98, %v257
  %v308 = vadd.f32 %v99, %v260
  %v309 = vadd.f32 %v100, %v265
  %v310 = vadd.f32 %v101, %v268
  %v311 = vadd.f32 %v102, %v273
  %v312 = vadd.f32 %v103, %v276
  %v313 = vadd.f32 %v104, %v281
  %v314 = vadd.f32 %v105, %v284
  %v315 = vadd.f32 %v106, %v289
  %v316 = vadd.f32 %v107, %v292
  %v317 = vadd.f32 %v108, %v297
  %v318 = vadd.f32 %v109, %v300
  %319 = vst [vmem:[#allocation2] sm:$0xff] %v303
  %320 = vst [vmem:[#allocation2 + $0x8] sm:$0xff] %v304
  %321 = vst [vmem:[#allocation2 + $0x10] sm:$0xff] %v305
  %322 = vst [vmem:[#allocation2 + $0x18] sm:$0xff] %v306
  %323 = vst [vmem:[#allocation2 + $0x20] sm:$0xff] %v307
  %324 = vst [vmem:[#allocation2 + $0x28] sm:$0xff] %v308
  %325 = vst [vmem:[#allocation2 + $0x30] sm:$0xff] %v309
  %326 = vst [vmem:[#allocation2 + $0x38] sm:$0xff] %v310
  %327 = vst [vmem:[#allocation2 + $0x40] sm:$0xff] %v311
  %328 = vst [vmem:[#allocation2 + $0x48] sm:$0xff] %v312
  %329 = vst [vmem:[#allocation2 + $0x50] sm:$0xff] %v313
  %330 = vst [vmem:[#allocation2 + $0x58] sm:$0xff] %v314
  %331 = vst [vmem:[#allocation2 + $0x60] sm:$0xff] %v315
  %332 = vst [vmem:[#allocation2 + $0x68] sm:$0xff] %v316
  %333 = vst [vmem:[#allocation2 + $0x70] sm:$0xff] %v317
  %334 = vst [vmem:[#allocation2 + $0x78] sm:$0xff] %v318
  // Predicated region
  $region26: #{roberta_graph_encoder.6} parent=0 // pred_check
    %p335 = pneg %p21
  $region27: #{roberta_graph_encoder.6} parent=0 // pred_check_branch
    %337 = sbr.rel (%p335) target = $region29
  $region28: #{roberta_graph_encoder.6} parent=0 // pred_region
    %v338 = vld [vmem:[%s2] sm:$0xff]
    %v339 = vld [vmem:[%s2 + $0x8] sm:$0xff]
    %v340 = vld [vmem:[%s2 + $0x10] sm:$0xff]
    %v341 = vld [vmem:[%s2 + $0x18] sm:$0xff]
    %v342 = vld [vmem:[%s2 + $0x20] sm:$0xff]
    %v343 = vld [vmem:[%s2 + $0x28] sm:$0xff]
    %v344 = vld [vmem:[%s2 + $0x30] sm:$0xff]
    %v345 = vld [vmem:[%s2 + $0x38] sm:$0xff]
    %v346 = vld [vmem:[%s2 + $0x40] sm:$0xff]
    %v347 = vld [vmem:[%s2 + $0x48] sm:$0xff]
    %v348 = vld [vmem:[%s2 + $0x50] sm:$0xff]
    %v349 = vld [vmem:[%s2 + $0x58] sm:$0xff]
    %v350 = vld [vmem:[%s2 + $0x60] sm:$0xff]
    %v351 = vld [vmem:[%s2 + $0x68] sm:$0xff]
    %v352 = vld [vmem:[%s2 + $0x70] sm:$0xff]
    %v353 = vld [vmem:[%s2 + $0x78] sm:$0xff]
    %v354 = vld [vmem:[#allocation2] sm:$0xff]
    %v355 = vld [vmem:[#allocation2 + $0x8] sm:$0xff]
    %v356 = vld [vmem:[#allocation2 + $0x10] sm:$0xff]
    %v357 = vld [vmem:[#allocation2 + $0x18] sm:$0xff]
    %v358 = vld [vmem:[#allocation2 + $0x20] sm:$0xff]
    %v359 = vld [vmem:[#allocation2 + $0x28] sm:$0xff]
    %v360 = vld [vmem:[#allocation2 + $0x30] sm:$0xff]
    %v361 = vld [vmem:[#allocation2 + $0x38] sm:$0xff]
    %v362 = vld [vmem:[#allocation2 + $0x40] sm:$0xff]
    %v363 = vld [vmem:[#allocation2 + $0x48] sm:$0xff]
    %v364 = vld [vmem:[#allocation2 + $0x50] sm:$0xff]
    %v365 = vld [vmem:[#allocation2 + $0x58] sm:$0xff]
    %v366 = vld [vmem:[#allocation2 + $0x60] sm:$0xff]
    %v367 = vld [vmem:[#allocation2 + $0x68] sm:$0xff]
    %v368 = vld [vmem:[#allocation2 + $0x70] sm:$0xff]
    %v369 = vld [vmem:[#allocation2 + $0x78] sm:$0xff]
    %371 = vset.pattern.permute.xlu0 0
    %372 = vperm.xlu0 %371, %v338
    %v373 = vpop.permute.xlu0 %372
    %376 = vset.pattern.permute.xlu0 0
    %377 = vperm.xlu0 %376, %v339
    %v378 = vpop.permute.xlu0 %377
    %381 = vset.pattern.permute.xlu0 0
    %382 = vperm.xlu0 %381, %v340
    %v383 = vpop.permute.xlu0 %382
    %386 = vset.pattern.permute.xlu0 0
    %387 = vperm.xlu0 %386, %v341
    %v388 = vpop.permute.xlu0 %387
    %391 = vset.pattern.permute.xlu0 0
    %392 = vperm.xlu0 %391, %v342
    %v393 = vpop.permute.xlu0 %392
    %396 = vset.pattern.permute.xlu0 0
    %397 = vperm.xlu0 %396, %v343
    %v398 = vpop.permute.xlu0 %397
    %401 = vset.pattern.permute.xlu0 0
    %402 = vperm.xlu0 %401, %v344
    %v403 = vpop.permute.xlu0 %402
    %406 = vset.pattern.permute.xlu0 0
    %407 = vperm.xlu0 %406, %v345
    %v408 = vpop.permute.xlu0 %407
    %411 = vset.pattern.permute.xlu0 0
    %412 = vperm.xlu0 %411, %v346
    %v413 = vpop.permute.xlu0 %412
    %416 = vset.pattern.permute.xlu0 0
    %417 = vperm.xlu0 %416, %v347
    %v418 = vpop.permute.xlu0 %417
    %421 = vset.pattern.permute.xlu0 0
    %422 = vperm.xlu0 %421, %v348
    %v423 = vpop.permute.xlu0 %422
    %426 = vset.pattern.permute.xlu0 0
    %427 = vperm.xlu0 %426, %v349
    %v428 = vpop.permute.xlu0 %427
    %431 = vset.pattern.permute.xlu0 0
    %432 = vperm.xlu0 %431, %v350
    %v433 = vpop.permute.xlu0 %432
    %436 = vset.pattern.permute.xlu0 0
    %437 = vperm.xlu0 %436, %v351
    %v438 = vpop.permute.xlu0 %437
    %441 = vset.pattern.permute.xlu0 0
    %442 = vperm.xlu0 %441, %v352
    %v443 = vpop.permute.xlu0 %442
    %446 = vset.pattern.permute.xlu0 0
    %447 = vperm.xlu0 %446, %v353
    %v448 = vpop.permute.xlu0 %447
    %v450 = vmul.f32 %v354, %v373
    %v451 = vmul.f32 %v355, %v378
    %v452 = vmul.f32 %v356, %v383
    %v453 = vmul.f32 %v357, %v388
    %v454 = vmul.f32 %v358, %v393
    %v455 = vmul.f32 %v359, %v398
    %v456 = vmul.f32 %v360, %v403
    %v457 = vmul.f32 %v361, %v408
    %v458 = vmul.f32 %v362, %v413
    %v459 = vmul.f32 %v363, %v418
    %v460 = vmul.f32 %v364, %v423
    %v461 = vmul.f32 %v365, %v428
    %v462 = vmul.f32 %v366, %v433
    %v463 = vmul.f32 %v367, %v438
    %v464 = vmul.f32 %v368, %v443
    %v465 = vmul.f32 %v369, %v448
    %v466 = vld [vmem:[%s3] sm:$0x1]
    %v468 = vlaneseq
    %v469 = vshrl.u32 %v468, 7
    %v470 = vsub.s32 0, %v469
    %v471 = vrot.slane %v466, %v470
    %v473 = vadd.f32 %v450, %v471
    %v474 = vadd.f32 %v451, %v471
    %v475 = vadd.f32 %v452, %v471
    %v476 = vadd.f32 %v453, %v471
    %v477 = vadd.f32 %v454, %v471
    %v478 = vadd.f32 %v455, %v471
    %v479 = vadd.f32 %v456, %v471
    %v480 = vadd.f32 %v457, %v471
    %v481 = vadd.f32 %v458, %v471
    %v482 = vadd.f32 %v459, %v471
    %v483 = vadd.f32 %v460, %v471
    %v484 = vadd.f32 %v461, %v471
    %v485 = vadd.f32 %v462, %v471
    %v486 = vadd.f32 %v463, %v471
    %v487 = vadd.f32 %v464, %v471
    %v488 = vadd.f32 %v465, %v471
    %v489 = vmax.f32 %v473, 0.0
    %v490 = vmax.f32 %v474, 0.0
    %v491 = vmax.f32 %v475, 0.0
    %v492 = vmax.f32 %v476, 0.0
    %v493 = vmax.f32 %v477, 0.0
    %v494 = vmax.f32 %v478, 0.0
    %v495 = vmax.f32 %v479, 0.0
    %v496 = vmax.f32 %v480, 0.0
    %v497 = vmax.f32 %v481, 0.0
    %v498 = vmax.f32 %v482, 0.0
    %v499 = vmax.f32 %v483, 0.0
    %v500 = vmax.f32 %v484, 0.0
    %v501 = vmax.f32 %v485, 0.0
    %v502 = vmax.f32 %v486, 0.0
    %v503 = vmax.f32 %v487, 0.0
    %v504 = vmax.f32 %v488, 0.0
    %v505 = vpack.c.bf16 %v490, %v489
    %v506 = vpack.c.bf16 %v492, %v491
    %v507 = vpack.c.bf16 %v494, %v493
    %v508 = vpack.c.bf16 %v496, %v495
    %v509 = vpack.c.bf16 %v498, %v497
    %v510 = vpack.c.bf16 %v500, %v499
    %v511 = vpack.c.bf16 %v502, %v501
    %v512 = vpack.c.bf16 %v504, %v503
    %v513 = vld [vmem:[%s4] sm:$0xf]
    %v514 = vld [vmem:[%s4 + $0x4] sm:$0xf]
    %v515 = vld [vmem:[%s4 + $0x8] sm:$0xf]
    %v516 = vld [vmem:[%s4 + $0xc] sm:$0xf]
    %v517 = vld [vmem:[%s4 + $0x10] sm:$0xf]
    %v518 = vld [vmem:[%s4 + $0x14] sm:$0xf]
    %v519 = vld [vmem:[%s4 + $0x18] sm:$0xf]
    %v520 = vld [vmem:[%s4 + $0x1c] sm:$0xf]
    %v521 = vld [vmem:[%s4 + $0x20] sm:$0xf]
    %v522 = vld [vmem:[%s4 + $0x24] sm:$0xf]
    %v523 = vld [vmem:[%s4 + $0x28] sm:$0xf]
    %v524 = vld [vmem:[%s4 + $0x2c] sm:$0xf]
    %v525 = vld [vmem:[%s4 + $0x30] sm:$0xf]
    %v526 = vld [vmem:[%s4 + $0x34] sm:$0xf]
    %v527 = vld [vmem:[%s4 + $0x38] sm:$0xf]
    %v528 = vld [vmem:[%s4 + $0x3c] sm:$0xf]
    %v545 = vunpack.c.l.b16 %v513
    %v546 = vunpack.c.l.b16 %v514
    %v547 = vunpack.c.l.b16 %v515
    %v548 = vunpack.c.l.b16 %v516
    %v549 = vunpack.c.l.b16 %v517
    %v550 = vunpack.c.l.b16 %v518
    %v551 = vunpack.c.l.b16 %v519
    %v552 = vunpack.c.l.b16 %v520
    %v553 = vunpack.c.l.b16 %v521
    %v554 = vunpack.c.l.b16 %v522
    %v555 = vunpack.c.l.b16 %v523
    %v556 = vunpack.c.l.b16 %v524
    %v557 = vunpack.c.l.b16 %v525
    %v558 = vunpack.c.l.b16 %v526
    %v559 = vunpack.c.l.b16 %v527
    %v560 = vunpack.c.l.b16 %v528
    %v561 = vpack.c.b16 %v546, %v545
    %v562 = vpack.c.b16 %v548, %v547
    %v563 = vpack.c.b16 %v550, %v549
    %v564 = vpack.c.b16 %v552, %v551
    %v565 = vpack.c.b16 %v554, %v553
    %v566 = vpack.c.b16 %v556, %v555
    %v567 = vpack.c.b16 %v558, %v557
    %v568 = vpack.c.b16 %v560, %v559
    %577 = vmatprep.subr.bf16.mxu0 0
    %578 = vmatpush1.bf16.msra.mxu0 %v561
    %579 = vmatprep.subr.bf16.mxu0 0
    %580 = vmatpush1.bf16.msra.mxu0 %v562
    %581 = vmatprep.subr.bf16.mxu0 0
    %582 = vmatpush1.bf16.msra.mxu0 %v563
    %583 = vmatprep.subr.bf16.mxu0 0
    %584 = vmatpush1.bf16.msra.mxu0 %v564
    %585 = vmatprep.subr.bf16.mxu0 0
    %586 = vmatpush1.bf16.msra.mxu0 %v565
    %587 = vmatprep.subr.bf16.mxu0 0
    %588 = vmatpush1.bf16.msra.mxu0 %v566
    %589 = vmatprep.subr.bf16.mxu0 0
    %590 = vmatpush1.bf16.msra.mxu0 %v567
    %591 = vmatprep.subr.bf16.mxu0 0
    %592 = vmatpush1.bf16.msra.mxu0 %v568
    %593 = vmatprep.subr.bf16.mxu0 0
    %594 = vmatpush1.bf16.msra.mxu0 0
    %595 = vmatprep.subr.bf16.mxu0 0
    %596 = vmatpush1.bf16.msra.mxu0 0
    %597 = vmatprep.subr.bf16.mxu0 0
    %598 = vmatpush1.bf16.msra.mxu0 0
    %599 = vmatprep.subr.bf16.mxu0 0
    %600 = vmatpush1.bf16.msra.mxu0 0
    %601 = vmatprep.subr.bf16.mxu0 0
    %602 = vmatpush1.bf16.msra.mxu0 0
    %603 = vmatprep.subr.bf16.mxu0 0
    %604 = vmatpush1.bf16.msra.mxu0 0
    %605 = vmatprep.subr.bf16.mxu0 0
    %606 = vmatpush1.bf16.msra.mxu0 0
    %607 = vmatprep.subr.bf16.mxu0 0
    %608 = vmatpush1.bf16.msra.mxu0 0
    %609 = vmatprep.mubr.bf16.mxu0 0
    %610 = vmatmul.mubr.bf16.gmra.mrb[0].mxu0 %v505
    %v611 = vpop.f32.mrb[0].mxu0
    %v612 = vadd.f32 0.0, %v611
    %v613 = vpop.f32.mrb[0].mxu0
    %v614 = vpop.f32.mrb[0].mxu0
    %v615 = vadd.f32 0.0, %v614
    %v616 = vpop.f32.mrb[0].mxu0
    %617 = vmatprep.mubr.bf16.mxu0 0
    %618 = vmatmul.mubr.bf16.gmra.mrb[0].mxu0 %v506
    %v619 = vpop.f32.mrb[0].mxu0
    %v620 = vadd.f32 0.0, %v619
    %v621 = vpop.f32.mrb[0].mxu0
    %v622 = vpop.f32.mrb[0].mxu0
    %v623 = vadd.f32 0.0, %v622
    %v624 = vpop.f32.mrb[0].mxu0
    %625 = vmatprep.mubr.bf16.mxu0 0
    %626 = vmatmul.mubr.bf16.gmra.mrb[0].mxu0 %v507
    %v627 = vpop.f32.mrb[0].mxu0
    %v628 = vadd.f32 0.0, %v627
    %v629 = vpop.f32.mrb[0].mxu0
    %v630 = vpop.f32.mrb[0].mxu0
    %v631 = vadd.f32 0.0, %v630
    %v632 = vpop.f32.mrb[0].mxu0
    %633 = vmatprep.mubr.bf16.mxu0 0
    %634 = vmatmul.mubr.bf16.gmra.mrb[0].mxu0 %v508
    %v635 = vpop.f32.mrb[0].mxu0
    %v636 = vadd.f32 0.0, %v635
    %v637 = vpop.f32.mrb[0].mxu0
    %v638 = vpop.f32.mrb[0].mxu0
    %v639 = vadd.f32 0.0, %v638
    %v640 = vpop.f32.mrb[0].mxu0
    %641 = vmatprep.mubr.bf16.mxu0 0
    %642 = vmatmul.mubr.bf16.gmra.mrb[0].mxu0 %v509
    %v643 = vpop.f32.mrb[0].mxu0
    %v644 = vadd.f32 0.0, %v643
    %v645 = vpop.f32.mrb[0].mxu0
    %v646 = vpop.f32.mrb[0].mxu0
    %v647 = vadd.f32 0.0, %v646
    %v648 = vpop.f32.mrb[0].mxu0
    %649 = vmatprep.mubr.bf16.mxu0 0
    %650 = vmatmul.mubr.bf16.gmra.mrb[0].mxu0 %v510
    %v651 = vpop.f32.mrb[0].mxu0
    %v652 = vadd.f32 0.0, %v651
    %v653 = vpop.f32.mrb[0].mxu0
    %v654 = vpop.f32.mrb[0].mxu0
    %v655 = vadd.f32 0.0, %v654
    %v656 = vpop.f32.mrb[0].mxu0
    %657 = vmatprep.mubr.bf16.mxu0 0
    %658 = vmatmul.mubr.bf16.gmra.mrb[0].mxu0 %v511
    %v659 = vpop.f32.mrb[0].mxu0
    %v660 = vadd.f32 0.0, %v659
    %v661 = vpop.f32.mrb[0].mxu0
    %v662 = vpop.f32.mrb[0].mxu0
    %v663 = vadd.f32 0.0, %v662
    %v664 = vpop.f32.mrb[0].mxu0
    %665 = vmatprep.mubr.bf16.mxu0 0
    %666 = vmatmul.mubr.bf16.gmra.mrb[0].mxu0 %v512
    %v667 = vpop.f32.mrb[0].mxu0
    %v668 = vadd.f32 0.0, %v667
    %v669 = vpop.f32.mrb[0].mxu0
    %v670 = vpop.f32.mrb[0].mxu0
    %v671 = vadd.f32 0.0, %v670
    %v672 = vpop.f32.mrb[0].mxu0
    %673 = vdwg.mxu0
    %v674 = vmul.f32 %v612, %v373
    %v675 = vmul.f32 %v615, %v378
    %v676 = vmul.f32 %v620, %v383
    %v677 = vmul.f32 %v623, %v388
    %v678 = vmul.f32 %v628, %v393
    %v679 = vmul.f32 %v631, %v398
    %v680 = vmul.f32 %v636, %v403
    %v681 = vmul.f32 %v639, %v408
    %v682 = vmul.f32 %v644, %v413
    %v683 = vmul.f32 %v647, %v418
    %v684 = vmul.f32 %v652, %v423
    %v685 = vmul.f32 %v655, %v428
    %v686 = vmul.f32 %v660, %v433
    %v687 = vmul.f32 %v663, %v438
    %v688 = vmul.f32 %v668, %v443
    %v689 = vmul.f32 %v671, %v448
    %v690 = vpack.c.bf16 %v675, %v674
    %v691 = vpack.c.bf16 %v677, %v676
    %v692 = vpack.c.bf16 %v679, %v678
    %v693 = vpack.c.bf16 %v681, %v680
    %v694 = vpack.c.bf16 %v683, %v682
    %v695 = vpack.c.bf16 %v685, %v684
    %v696 = vpack.c.bf16 %v687, %v686
    %v697 = vpack.c.bf16 %v689, %v688
    %v706 = vunpack.c.l.b16 %v690
    %v707 = vunpack.c.h.b16 %v690
    %v708 = vunpack.c.l.b16 %v691
    %v709 = vunpack.c.h.b16 %v691
    %v710 = vunpack.c.l.b16 %v692
    %v711 = vunpack.c.h.b16 %v692
    %v712 = vunpack.c.l.b16 %v693
    %v713 = vunpack.c.h.b16 %v693
    %v714 = vunpack.c.l.b16 %v694
    %v715 = vunpack.c.h.b16 %v694
    %v716 = vunpack.c.l.b16 %v695
    %v717 = vunpack.c.h.b16 %v695
    %v718 = vunpack.c.l.b16 %v696
    %v719 = vunpack.c.h.b16 %v696
    %v720 = vunpack.c.l.b16 %v697
    %v721 = vunpack.c.h.b16 %v697
    %v722 = vpack.c.b16 %v706, %v706
    %v723 = vpack.c.b16 %v707, %v707
    %v724 = vpack.c.b16 %v708, %v708
    %v725 = vpack.c.b16 %v709, %v709
    %v726 = vpack.c.b16 %v710, %v710
    %v727 = vpack.c.b16 %v711, %v711
    %v728 = vpack.c.b16 %v712, %v712
    %v729 = vpack.c.b16 %v713, %v713
    %v730 = vpack.c.b16 %v714, %v714
    %v731 = vpack.c.b16 %v715, %v715
    %v732 = vpack.c.b16 %v716, %v716
    %v733 = vpack.c.b16 %v717, %v717
    %v734 = vpack.c.b16 %v718, %v718
    %v735 = vpack.c.b16 %v719, %v719
    %v736 = vpack.c.b16 %v720, %v720
    %v737 = vpack.c.b16 %v721, %v721
    %754 = vst [vmem:[%s5] sm:$0xf] %v722
    %755 = vst [vmem:[%s5 + $0x4] sm:$0xf] %v723
    %756 = vst [vmem:[%s5 + $0x8] sm:$0xf] %v724
    %757 = vst [vmem:[%s5 + $0xc] sm:$0xf] %v725
    %758 = vst [vmem:[%s5 + $0x10] sm:$0xf] %v726
    %759 = vst [vmem:[%s5 + $0x14] sm:$0xf] %v727
    %760 = vst [vmem:[%s5 + $0x18] sm:$0xf] %v728
    %761 = vst [vmem:[%s5 + $0x1c] sm:$0xf] %v729
    %762 = vst [vmem:[%s5 + $0x20] sm:$0xf] %v730
    %763 = vst [vmem:[%s5 + $0x24] sm:$0xf] %v731
    %764 = vst [vmem:[%s5 + $0x28] sm:$0xf] %v732
    %765 = vst [vmem:[%s5 + $0x2c] sm:$0xf] %v733
    %766 = vst [vmem:[%s5 + $0x30] sm:$0xf] %v734
    %767 = vst [vmem:[%s5 + $0x34] sm:$0xf] %v735
    %768 = vst [vmem:[%s5 + $0x38] sm:$0xf] %v736
    %769 = vst [vmem:[%s5 + $0x3c] sm:$0xf] %v737
  $region29: #{roberta_graph_encoder.6} parent=0 // pred_fallthru
    _
  // Predicated region
  $region30: #{roberta_graph_encoder.6} parent=0 // pred_check
    _
  $region31: #{roberta_graph_encoder.6} parent=0 // pred_check_branch
    %771 = sbr.rel (0) target = $region33
  $region32: #{roberta_graph_encoder.6} parent=0 // pred_region
    _
  $region33: #{roberta_graph_encoder.6} parent=0 // pred_fallthru
    _
  // Predicated region
  $region34: #{roberta_graph_encoder.6} parent=0 // pred_check
    _
  $region35: #{roberta_graph_encoder.6} parent=0 // pred_check_branch
    %773 = sbr.rel (0) target = $region37
  $region36: #{roberta_graph_encoder.6} parent=0 // pred_region
    _
  $region37: #{roberta_graph_encoder.6} parent=0 // pred_fallthru
    _

// kernel: roberta_graph_encoder.7
$region0: #{roberta_graph_encoder.7}
  #allocation0 [shape = 'u32[]', space=smem, size = 0x4, offset = 0x4, fixed_abs, tag = 'smem constant byte address 0x4 - core index']
  #allocation1 [shape = 'u32[144,128]{1,0:T(1,128)}', space=vmem, size = 0x12000, scoped, tag = 'internal scratch']
  #allocation2 [shape = 'f32[128,128]{1,0:T(8,128)}', space=vmem, size = 0x10000, scoped, tag = 'scratch operand']
  %s0 = inlined_call_operand.vmem [shape: s8[128,128], index: 0, kind: input, shape index: {}]
  %s1 = inlined_call_operand.vmem [shape: bf16[128,128], index: 1, kind: input, shape index: {}]
  %s2 = inlined_call_operand.vmem [shape: f32[128,1], index: 2, kind: input, shape index: {}]
  %s3 = inlined_call_operand.vmem [shape: f32[1,128], index: 3, kind: input, shape index: {}]
  %s4 = inlined_call_operand.vmem [shape: f32[128,128], index: 4, kind: output, shape index: {}]
  %s5 = sld [smem:[#allocation0]]
  $region34: #{roberta_graph_encoder.7} parent=0
    _
  %s7 = ssub.s32 1, %s5
  %s8 = scalar_select 0, %s7, %s5
  // Predicated region
  $region2: #{roberta_graph_encoder.7} parent=0 // pred_check
    _
  $region3: #{roberta_graph_encoder.7} parent=0 // pred_check_branch
    %10 = sbr.rel (0) target = $region5
  $region4: #{roberta_graph_encoder.7} parent=0 // pred_region
    _
  $region5: #{roberta_graph_encoder.7} parent=0 // pred_fallthru
    _
  // Predicated region
  $region6: #{roberta_graph_encoder.7} parent=0 // pred_check
    _
  $region7: #{roberta_graph_encoder.7} parent=0 // pred_check_branch
    %12 = sbr.rel (0) target = $region9
  $region8: #{roberta_graph_encoder.7} parent=0 // pred_region
    _
  $region9: #{roberta_graph_encoder.7} parent=0 // pred_fallthru
    _
  // Predicated region
  $region10: #{roberta_graph_encoder.7} parent=0 // pred_check
    _
  $region11: #{roberta_graph_encoder.7} parent=0 // pred_check_branch
    %14 = sbr.rel (0) target = $region13
  $region12: #{roberta_graph_encoder.7} parent=0 // pred_region
    _
  $region13: #{roberta_graph_encoder.7} parent=0 // pred_fallthru
    _
  // Predicated region
  $region14: #{roberta_graph_encoder.7} parent=0 // pred_check
    _
  $region15: #{roberta_graph_encoder.7} parent=0 // pred_check_branch
    %16 = sbr.rel (0) target = $region17
  $region16: #{roberta_graph_encoder.7} parent=0 // pred_region
    _
  $region17: #{roberta_graph_encoder.7} parent=0 // pred_fallthru
    _
  %p18 = scmp.eq.s32.totalorder 0, 0
  // Predicated region
  $region18: #{roberta_graph_encoder.7} parent=0 // pred_check
    %p19 = pneg %p18
  $region19: #{roberta_graph_encoder.7} parent=0 // pred_check_branch
    %21 = sbr.rel (%p19) target = $region21
  $region20: #{roberta_graph_encoder.7} parent=0 // pred_region
    %22 = vst [vmem:[#allocation2] sm:$0xff] 0.0
    %23 = vst [vmem:[#allocation2 + $0x8] sm:$0xff] 0.0
    %24 = vst [vmem:[#allocation2 + $0x10] sm:$0xff] 0.0
    %25 = vst [vmem:[#allocation2 + $0x18] sm:$0xff] 0.0
    %26 = vst [vmem:[#allocation2 + $0x20] sm:$0xff] 0.0
    %27 = vst [vmem:[#allocation2 + $0x28] sm:$0xff] 0.0
    %28 = vst [vmem:[#allocation2 + $0x30] sm:$0xff] 0.0
    %29 = vst [vmem:[#allocation2 + $0x38] sm:$0xff] 0.0
    %30 = vst [vmem:[#allocation2 + $0x40] sm:$0xff] 0.0
    %31 = vst [vmem:[#allocation2 + $0x48] sm:$0xff] 0.0
    %32 = vst [vmem:[#allocation2 + $0x50] sm:$0xff] 0.0
    %33 = vst [vmem:[#allocation2 + $0x58] sm:$0xff] 0.0
    %34 = vst [vmem:[#allocation2 + $0x60] sm:$0xff] 0.0
    %35 = vst [vmem:[#allocation2 + $0x68] sm:$0xff] 0.0
    %36 = vst [vmem:[#allocation2 + $0x70] sm:$0xff] 0.0
    %37 = vst [vmem:[#allocation2 + $0x78] sm:$0xff] 0.0
  $region21: #{roberta_graph_encoder.7} parent=0 // pred_fallthru
    _
  %v38 = vld [vmem:[%s0] sm:$0x3]
  %v39 = vld [vmem:[%s0 + $0x2] sm:$0x3]
  %v40 = vld [vmem:[%s0 + $0x4] sm:$0x3]
  %v41 = vld [vmem:[%s0 + $0x6] sm:$0x3]
  %v42 = vld [vmem:[%s0 + $0x8] sm:$0x3]
  %v43 = vld [vmem:[%s0 + $0xa] sm:$0x3]
  %v44 = vld [vmem:[%s0 + $0xc] sm:$0x3]
  %v45 = vld [vmem:[%s0 + $0xe] sm:$0x3]
  %v46 = vld [vmem:[%s0 + $0x10] sm:$0x3]
  %v47 = vld [vmem:[%s0 + $0x12] sm:$0x3]
  %v48 = vld [vmem:[%s0 + $0x14] sm:$0x3]
  %v49 = vld [vmem:[%s0 + $0x16] sm:$0x3]
  %v50 = vld [vmem:[%s0 + $0x18] sm:$0x3]
  %v51 = vld [vmem:[%s0 + $0x1a] sm:$0x3]
  %v52 = vld [vmem:[%s0 + $0x1c] sm:$0x3]
  %v53 = vld [vmem:[%s0 + $0x1e] sm:$0x3]
  %v54 = vunpack.c.l.s8.bf16 %v38
  %v55 = vunpack.c.l.s8.bf16 %v39
  %v56 = vunpack.c.l.s8.bf16 %v40
  %v57 = vunpack.c.l.s8.bf16 %v41
  %v58 = vunpack.c.l.s8.bf16 %v42
  %v59 = vunpack.c.l.s8.bf16 %v43
  %v60 = vunpack.c.l.s8.bf16 %v44
  %v61 = vunpack.c.l.s8.bf16 %v45
  %v62 = vunpack.c.l.s8.bf16 %v46
  %v63 = vunpack.c.l.s8.bf16 %v47
  %v64 = vunpack.c.l.s8.bf16 %v48
  %v65 = vunpack.c.l.s8.bf16 %v49
  %v66 = vunpack.c.l.s8.bf16 %v50
  %v67 = vunpack.c.l.s8.bf16 %v51
  %v68 = vunpack.c.l.s8.bf16 %v52
  %v69 = vunpack.c.l.s8.bf16 %v53
  %s70 = smul.u32 0, 128
  %s71 = sshra.s32 %s70, 3
  %s72 = sand.u32 %s70, 7
  %s73 = smul.addr %s71, 4
  %s74 = scalar_lea.vmem %s1, %s73
  %v75 = vld [vmem:[%s74] sm:$0xf]
  %v76 = vld [vmem:[%s74 + $0x4] sm:$0xf]
  %v77 = vld [vmem:[%s74 + $0x8] sm:$0xf]
  %v78 = vld [vmem:[%s74 + $0xc] sm:$0xf]
  %v79 = vld [vmem:[%s74 + $0x10] sm:$0xf]
  %v80 = vld [vmem:[%s74 + $0x14] sm:$0xf]
  %v81 = vld [vmem:[%s74 + $0x18] sm:$0xf]
  %v82 = vld [vmem:[%s74 + $0x1c] sm:$0xf]
  %v83 = vld [vmem:[%s74 + $0x20] sm:$0xf]
  %v84 = vld [vmem:[%s74 + $0x24] sm:$0xf]
  %v85 = vld [vmem:[%s74 + $0x28] sm:$0xf]
  %v86 = vld [vmem:[%s74 + $0x2c] sm:$0xf]
  %v87 = vld [vmem:[%s74 + $0x30] sm:$0xf]
  %v88 = vld [vmem:[%s74 + $0x34] sm:$0xf]
  %v89 = vld [vmem:[%s74 + $0x38] sm:$0xf]
  %v90 = vld [vmem:[%s74 + $0x3c] sm:$0xf]
  %v91 = vld [vmem:[#allocation2] sm:$0xff]
  %v92 = vld [vmem:[#allocation2 + $0x8] sm:$0xff]
  %v93 = vld [vmem:[#allocation2 + $0x10] sm:$0xff]
  %v94 = vld [vmem:[#allocation2 + $0x18] sm:$0xff]
  %v95 = vld [vmem:[#allocation2 + $0x20] sm:$0xff]
  %v96 = vld [vmem:[#allocation2 + $0x28] sm:$0xff]
  %v97 = vld [vmem:[#allocation2 + $0x30] sm:$0xff]
  %v98 = vld [vmem:[#allocation2 + $0x38] sm:$0xff]
  %v99 = vld [vmem:[#allocation2 + $0x40] sm:$0xff]
  %v100 = vld [vmem:[#allocation2 + $0x48] sm:$0xff]
  %v101 = vld [vmem:[#allocation2 + $0x50] sm:$0xff]
  %v102 = vld [vmem:[#allocation2 + $0x58] sm:$0xff]
  %v103 = vld [vmem:[#allocation2 + $0x60] sm:$0xff]
  %v104 = vld [vmem:[#allocation2 + $0x68] sm:$0xff]
  %v105 = vld [vmem:[#allocation2 + $0x70] sm:$0xff]
  %v106 = vld [vmem:[#allocation2 + $0x78] sm:$0xff]
  %v123 = vunpack.c.l.b16 %v54
  %v124 = vunpack.c.l.b16 %v55
  %v125 = vunpack.c.l.b16 %v56
  %v126 = vunpack.c.l.b16 %v57
  %v127 = vunpack.c.l.b16 %v58
  %v128 = vunpack.c.l.b16 %v59
  %v129 = vunpack.c.l.b16 %v60
  %v130 = vunpack.c.l.b16 %v61
  %v131 = vunpack.c.l.b16 %v62
  %v132 = vunpack.c.l.b16 %v63
  %v133 = vunpack.c.l.b16 %v64
  %v134 = vunpack.c.l.b16 %v65
  %v135 = vunpack.c.l.b16 %v66
  %v136 = vunpack.c.l.b16 %v67
  %v137 = vunpack.c.l.b16 %v68
  %v138 = vunpack.c.l.b16 %v69
  %v139 = vpack.c.b16 %v124, %v123
  %v140 = vpack.c.b16 %v126, %v125
  %v141 = vpack.c.b16 %v128, %v127
  %v142 = vpack.c.b16 %v130, %v129
  %v143 = vpack.c.b16 %v132, %v131
  %v144 = vpack.c.b16 %v134, %v133
  %v145 = vpack.c.b16 %v136, %v135
  %v146 = vpack.c.b16 %v138, %v137
  %v171 = vunpack.c.l.b16 %v75
  %v172 = vunpack.c.l.b16 %v76
  %v173 = vunpack.c.l.b16 %v77
  %v174 = vunpack.c.l.b16 %v78
  %v175 = vunpack.c.l.b16 %v79
  %v176 = vunpack.c.l.b16 %v80
  %v177 = vunpack.c.l.b16 %v81
  %v178 = vunpack.c.l.b16 %v82
  %v179 = vunpack.c.l.b16 %v83
  %v180 = vunpack.c.l.b16 %v84
  %v181 = vunpack.c.l.b16 %v85
  %v182 = vunpack.c.l.b16 %v86
  %v183 = vunpack.c.l.b16 %v87
  %v184 = vunpack.c.l.b16 %v88
  %v185 = vunpack.c.l.b16 %v89
  %v186 = vunpack.c.l.b16 %v90
  %v187 = vpack.c.b16 %v172, %v171
  %v188 = vpack.c.b16 %v174, %v173
  %v189 = vpack.c.b16 %v176, %v175
  %v190 = vpack.c.b16 %v178, %v177
  %v191 = vpack.c.b16 %v180, %v179
  %v192 = vpack.c.b16 %v182, %v181
  %v193 = vpack.c.b16 %v184, %v183
  %v194 = vpack.c.b16 %v186, %v185
  %203 = vmatprep.subr.bf16.mxu0 0
  %204 = vmatpush1.bf16.msra.mxu0 %v187
  %205 = vmatprep.subr.bf16.mxu0 0
  %206 = vmatpush1.bf16.msra.mxu0 %v188
  %207 = vmatprep.subr.bf16.mxu0 0
  %208 = vmatpush1.bf16.msra.mxu0 %v189
  %209 = vmatprep.subr.bf16.mxu0 0
  %210 = vmatpush1.bf16.msra.mxu0 %v190
  %211 = vmatprep.subr.bf16.mxu0 0
  %212 = vmatpush1.bf16.msra.mxu0 %v191
  %213 = vmatprep.subr.bf16.mxu0 0
  %214 = vmatpush1.bf16.msra.mxu0 %v192
  %215 = vmatprep.subr.bf16.mxu0 0
  %216 = vmatpush1.bf16.msra.mxu0 %v193
  %217 = vmatprep.subr.bf16.mxu0 0
  %218 = vmatpush1.bf16.msra.mxu0 %v194
  %219 = vmatprep.subr.bf16.mxu0 0
  %220 = vmatpush1.bf16.msra.mxu0 0
  %221 = vmatprep.subr.bf16.mxu0 0
  %222 = vmatpush1.bf16.msra.mxu0 0
  %223 = vmatprep.subr.bf16.mxu0 0
  %224 = vmatpush1.bf16.msra.mxu0 0
  %225 = vmatprep.subr.bf16.mxu0 0
  %226 = vmatpush1.bf16.msra.mxu0 0
  %227 = vmatprep.subr.bf16.mxu0 0
  %228 = vmatpush1.bf16.msra.mxu0 0
  %229 = vmatprep.subr.bf16.mxu0 0
  %230 = vmatpush1.bf16.msra.mxu0 0
  %231 = vmatprep.subr.bf16.mxu0 0
  %232 = vmatpush1.bf16.msra.mxu0 0
  %233 = vmatprep.subr.bf16.mxu0 0
  %234 = vmatpush1.bf16.msra.mxu0 0
  %235 = vmatprep.mubr.bf16.mxu0 0
  %236 = vmatmul.mubr.bf16.gmra.mrb[0].mxu0 %v139
  %v237 = vpop.f32.mrb[0].mxu0
  %v238 = vadd.f32 0.0, %v237
  %v239 = vpop.f32.mrb[0].mxu0
  %v240 = vpop.f32.mrb[0].mxu0
  %v241 = vadd.f32 0.0, %v240
  %v242 = vpop.f32.mrb[0].mxu0
  %243 = vmatprep.mubr.bf16.mxu0 0
  %244 = vmatmul.mubr.bf16.gmra.mrb[0].mxu0 %v140
  %v245 = vpop.f32.mrb[0].mxu0
  %v246 = vadd.f32 0.0, %v245
  %v247 = vpop.f32.mrb[0].mxu0
  %v248 = vpop.f32.mrb[0].mxu0
  %v249 = vadd.f32 0.0, %v248
  %v250 = vpop.f32.mrb[0].mxu0
  %251 = vmatprep.mubr.bf16.mxu0 0
  %252 = vmatmul.mubr.bf16.gmra.mrb[0].mxu0 %v141
  %v253 = vpop.f32.mrb[0].mxu0
  %v254 = vadd.f32 0.0, %v253
  %v255 = vpop.f32.mrb[0].mxu0
  %v256 = vpop.f32.mrb[0].mxu0
  %v257 = vadd.f32 0.0, %v256
  %v258 = vpop.f32.mrb[0].mxu0
  %259 = vmatprep.mubr.bf16.mxu0 0
  %260 = vmatmul.mubr.bf16.gmra.mrb[0].mxu0 %v142
  %v261 = vpop.f32.mrb[0].mxu0
  %v262 = vadd.f32 0.0, %v261
  %v263 = vpop.f32.mrb[0].mxu0
  %v264 = vpop.f32.mrb[0].mxu0
  %v265 = vadd.f32 0.0, %v264
  %v266 = vpop.f32.mrb[0].mxu0
  %267 = vmatprep.mubr.bf16.mxu0 0
  %268 = vmatmul.mubr.bf16.gmra.mrb[0].mxu0 %v143
  %v269 = vpop.f32.mrb[0].mxu0
  %v270 = vadd.f32 0.0, %v269
  %v271 = vpop.f32.mrb[0].mxu0
  %v272 = vpop.f32.mrb[0].mxu0
  %v273 = vadd.f32 0.0, %v272
  %v274 = vpop.f32.mrb[0].mxu0
  %275 = vmatprep.mubr.bf16.mxu0 0
  %276 = vmatmul.mubr.bf16.gmra.mrb[0].mxu0 %v144
  %v277 = vpop.f32.mrb[0].mxu0
  %v278 = vadd.f32 0.0, %v277
  %v279 = vpop.f32.mrb[0].mxu0
  %v280 = vpop.f32.mrb[0].mxu0
  %v281 = vadd.f32 0.0, %v280
  %v282 = vpop.f32.mrb[0].mxu0
  %283 = vmatprep.mubr.bf16.mxu0 0
  %284 = vmatmul.mubr.bf16.gmra.mrb[0].mxu0 %v145
  %v285 = vpop.f32.mrb[0].mxu0
  %v286 = vadd.f32 0.0, %v285
  %v287 = vpop.f32.mrb[0].mxu0
  %v288 = vpop.f32.mrb[0].mxu0
  %v289 = vadd.f32 0.0, %v288
  %v290 = vpop.f32.mrb[0].mxu0
  %291 = vmatprep.mubr.bf16.mxu0 0
  %292 = vmatmul.mubr.bf16.gmra.mrb[0].mxu0 %v146
  %v293 = vpop.f32.mrb[0].mxu0
  %v294 = vadd.f32 0.0, %v293
  %v295 = vpop.f32.mrb[0].mxu0
  %v296 = vpop.f32.mrb[0].mxu0
  %v297 = vadd.f32 0.0, %v296
  %v298 = vpop.f32.mrb[0].mxu0
  %299 = vdwg.mxu0
  %v300 = vadd.f32 %v91, %v238
  %v301 = vadd.f32 %v92, %v241
  %v302 = vadd.f32 %v93, %v246
  %v303 = vadd.f32 %v94, %v249
  %v304 = vadd.f32 %v95, %v254
  %v305 = vadd.f32 %v96, %v257
  %v306 = vadd.f32 %v97, %v262
  %v307 = vadd.f32 %v98, %v265
  %v308 = vadd.f32 %v99, %v270
  %v309 = vadd.f32 %v100, %v273
  %v310 = vadd.f32 %v101, %v278
  %v311 = vadd.f32 %v102, %v281
  %v312 = vadd.f32 %v103, %v286
  %v313 = vadd.f32 %v104, %v289
  %v314 = vadd.f32 %v105, %v294
  %v315 = vadd.f32 %v106, %v297
  %316 = vst [vmem:[#allocation2] sm:$0xff] %v300
  %317 = vst [vmem:[#allocation2 + $0x8] sm:$0xff] %v301
  %318 = vst [vmem:[#allocation2 + $0x10] sm:$0xff] %v302
  %319 = vst [vmem:[#allocation2 + $0x18] sm:$0xff] %v303
  %320 = vst [vmem:[#allocation2 + $0x20] sm:$0xff] %v304
  %321 = vst [vmem:[#allocation2 + $0x28] sm:$0xff] %v305
  %322 = vst [vmem:[#allocation2 + $0x30] sm:$0xff] %v306
  %323 = vst [vmem:[#allocation2 + $0x38] sm:$0xff] %v307
  %324 = vst [vmem:[#allocation2 + $0x40] sm:$0xff] %v308
  %325 = vst [vmem:[#allocation2 + $0x48] sm:$0xff] %v309
  %326 = vst [vmem:[#allocation2 + $0x50] sm:$0xff] %v310
  %327 = vst [vmem:[#allocation2 + $0x58] sm:$0xff] %v311
  %328 = vst [vmem:[#allocation2 + $0x60] sm:$0xff] %v312
  %329 = vst [vmem:[#allocation2 + $0x68] sm:$0xff] %v313
  %330 = vst [vmem:[#allocation2 + $0x70] sm:$0xff] %v314
  %331 = vst [vmem:[#allocation2 + $0x78] sm:$0xff] %v315
  // Predicated region
  $region22: #{roberta_graph_encoder.7} parent=0 // pred_check
    %p332 = pneg %p18
  $region23: #{roberta_graph_encoder.7} parent=0 // pred_check_branch
    %334 = sbr.rel (%p332) target = $region25
  $region24: #{roberta_graph_encoder.7} parent=0 // pred_region
    %v335 = vld [vmem:[#allocation2] sm:$0xff]
    %v336 = vld [vmem:[#allocation2 + $0x8] sm:$0xff]
    %v337 = vld [vmem:[#allocation2 + $0x10] sm:$0xff]
    %v338 = vld [vmem:[#allocation2 + $0x18] sm:$0xff]
    %v339 = vld [vmem:[#allocation2 + $0x20] sm:$0xff]
    %v340 = vld [vmem:[#allocation2 + $0x28] sm:$0xff]
    %v341 = vld [vmem:[#allocation2 + $0x30] sm:$0xff]
    %v342 = vld [vmem:[#allocation2 + $0x38] sm:$0xff]
    %v343 = vld [vmem:[#allocation2 + $0x40] sm:$0xff]
    %v344 = vld [vmem:[#allocation2 + $0x48] sm:$0xff]
    %v345 = vld [vmem:[#allocation2 + $0x50] sm:$0xff]
    %v346 = vld [vmem:[#allocation2 + $0x58] sm:$0xff]
    %v347 = vld [vmem:[#allocation2 + $0x60] sm:$0xff]
    %v348 = vld [vmem:[#allocation2 + $0x68] sm:$0xff]
    %v349 = vld [vmem:[#allocation2 + $0x70] sm:$0xff]
    %v350 = vld [vmem:[#allocation2 + $0x78] sm:$0xff]
    %v351 = vld [vmem:[%s2] sm:$0xff]
    %v352 = vld [vmem:[%s2 + $0x8] sm:$0xff]
    %v353 = vld [vmem:[%s2 + $0x10] sm:$0xff]
    %v354 = vld [vmem:[%s2 + $0x18] sm:$0xff]
    %v355 = vld [vmem:[%s2 + $0x20] sm:$0xff]
    %v356 = vld [vmem:[%s2 + $0x28] sm:$0xff]
    %v357 = vld [vmem:[%s2 + $0x30] sm:$0xff]
    %v358 = vld [vmem:[%s2 + $0x38] sm:$0xff]
    %v359 = vld [vmem:[%s2 + $0x40] sm:$0xff]
    %v360 = vld [vmem:[%s2 + $0x48] sm:$0xff]
    %v361 = vld [vmem:[%s2 + $0x50] sm:$0xff]
    %v362 = vld [vmem:[%s2 + $0x58] sm:$0xff]
    %v363 = vld [vmem:[%s2 + $0x60] sm:$0xff]
    %v364 = vld [vmem:[%s2 + $0x68] sm:$0xff]
    %v365 = vld [vmem:[%s2 + $0x70] sm:$0xff]
    %v366 = vld [vmem:[%s2 + $0x78] sm:$0xff]
    %368 = vset.pattern.permute.xlu0 0
    %369 = vperm.xlu0 %368, %v351
    %v370 = vpop.permute.xlu0 %369
    %373 = vset.pattern.permute.xlu0 0
    %374 = vperm.xlu0 %373, %v352
    %v375 = vpop.permute.xlu0 %374
    %378 = vset.pattern.permute.xlu0 0
    %379 = vperm.xlu0 %378, %v353
    %v380 = vpop.permute.xlu0 %379
    %383 = vset.pattern.permute.xlu0 0
    %384 = vperm.xlu0 %383, %v354
    %v385 = vpop.permute.xlu0 %384
    %388 = vset.pattern.permute.xlu0 0
    %389 = vperm.xlu0 %388, %v355
    %v390 = vpop.permute.xlu0 %389
    %393 = vset.pattern.permute.xlu0 0
    %394 = vperm.xlu0 %393, %v356
    %v395 = vpop.permute.xlu0 %394
    %398 = vset.pattern.permute.xlu0 0
    %399 = vperm.xlu0 %398, %v357
    %v400 = vpop.permute.xlu0 %399
    %403 = vset.pattern.permute.xlu0 0
    %404 = vperm.xlu0 %403, %v358
    %v405 = vpop.permute.xlu0 %404
    %408 = vset.pattern.permute.xlu0 0
    %409 = vperm.xlu0 %408, %v359
    %v410 = vpop.permute.xlu0 %409
    %413 = vset.pattern.permute.xlu0 0
    %414 = vperm.xlu0 %413, %v360
    %v415 = vpop.permute.xlu0 %414
    %418 = vset.pattern.permute.xlu0 0
    %419 = vperm.xlu0 %418, %v361
    %v420 = vpop.permute.xlu0 %419
    %423 = vset.pattern.permute.xlu0 0
    %424 = vperm.xlu0 %423, %v362
    %v425 = vpop.permute.xlu0 %424
    %428 = vset.pattern.permute.xlu0 0
    %429 = vperm.xlu0 %428, %v363
    %v430 = vpop.permute.xlu0 %429
    %433 = vset.pattern.permute.xlu0 0
    %434 = vperm.xlu0 %433, %v364
    %v435 = vpop.permute.xlu0 %434
    %438 = vset.pattern.permute.xlu0 0
    %439 = vperm.xlu0 %438, %v365
    %v440 = vpop.permute.xlu0 %439
    %443 = vset.pattern.permute.xlu0 0
    %444 = vperm.xlu0 %443, %v366
    %v445 = vpop.permute.xlu0 %444
    %v447 = vmul.f32 %v335, %v370
    %v448 = vmul.f32 %v336, %v375
    %v449 = vmul.f32 %v337, %v380
    %v450 = vmul.f32 %v338, %v385
    %v451 = vmul.f32 %v339, %v390
    %v452 = vmul.f32 %v340, %v395
    %v453 = vmul.f32 %v341, %v400
    %v454 = vmul.f32 %v342, %v405
    %v455 = vmul.f32 %v343, %v410
    %v456 = vmul.f32 %v344, %v415
    %v457 = vmul.f32 %v345, %v420
    %v458 = vmul.f32 %v346, %v425
    %v459 = vmul.f32 %v347, %v430
    %v460 = vmul.f32 %v348, %v435
    %v461 = vmul.f32 %v349, %v440
    %v462 = vmul.f32 %v350, %v445
    %v463 = vld [vmem:[%s3] sm:$0x1]
    %v465 = vlaneseq
    %v466 = vshrl.u32 %v465, 7
    %v467 = vsub.s32 0, %v466
    %v468 = vrot.slane %v463, %v467
    %v470 = vadd.f32 %v447, %v468
    %v471 = vadd.f32 %v448, %v468
    %v472 = vadd.f32 %v449, %v468
    %v473 = vadd.f32 %v450, %v468
    %v474 = vadd.f32 %v451, %v468
    %v475 = vadd.f32 %v452, %v468
    %v476 = vadd.f32 %v453, %v468
    %v477 = vadd.f32 %v454, %v468
    %v478 = vadd.f32 %v455, %v468
    %v479 = vadd.f32 %v456, %v468
    %v480 = vadd.f32 %v457, %v468
    %v481 = vadd.f32 %v458, %v468
    %v482 = vadd.f32 %v459, %v468
    %v483 = vadd.f32 %v460, %v468
    %v484 = vadd.f32 %v461, %v468
    %v485 = vadd.f32 %v462, %v468
    %486 = vst [vmem:[%s4] sm:$0xff] %v470
    %487 = vst [vmem:[%s4 + $0x8] sm:$0xff] %v471
    %488 = vst [vmem:[%s4 + $0x10] sm:$0xff] %v472
    %489 = vst [vmem:[%s4 + $0x18] sm:$0xff] %v473
    %490 = vst [vmem:[%s4 + $0x20] sm:$0xff] %v474
    %491 = vst [vmem:[%s4 + $0x28] sm:$0xff] %v475
    %492 = vst [vmem:[%s4 + $0x30] sm:$0xff] %v476
    %493 = vst [vmem:[%s4 + $0x38] sm:$0xff] %v477
    %494 = vst [vmem:[%s4 + $0x40] sm:$0xff] %v478
    %495 = vst [vmem:[%s4 + $0x48] sm:$0xff] %v479
    %496 = vst [vmem:[%s4 + $0x50] sm:$0xff] %v480
    %497 = vst [vmem:[%s4 + $0x58] sm:$0xff] %v481
    %498 = vst [vmem:[%s4 + $0x60] sm:$0xff] %v482
    %499 = vst [vmem:[%s4 + $0x68] sm:$0xff] %v483
    %500 = vst [vmem:[%s4 + $0x70] sm:$0xff] %v484
    %501 = vst [vmem:[%s4 + $0x78] sm:$0xff] %v485
  $region25: #{roberta_graph_encoder.7} parent=0 // pred_fallthru
    _
  // Predicated region
  $region26: #{roberta_graph_encoder.7} parent=0 // pred_check
    _
  $region27: #{roberta_graph_encoder.7} parent=0 // pred_check_branch
    %503 = sbr.rel (0) target = $region29
  $region28: #{roberta_graph_encoder.7} parent=0 // pred_region
    _
  $region29: #{roberta_graph_encoder.7} parent=0 // pred_fallthru
    _
  // Predicated region
  $region30: #{roberta_graph_encoder.7} parent=0 // pred_check
    _
  $region31: #{roberta_graph_encoder.7} parent=0 // pred_check_branch
    %505 = sbr.rel (0) target = $region33
  $region32: #{roberta_graph_encoder.7} parent=0 // pred_region
    _
  $region33: #{roberta_graph_encoder.7} parent=0 // pred_fallthru
    _

</llo_original>
